<compile_context>
chip_gen: v7x
topology: tpu7x:2x2x1
jax: 0.10.0
libtpu: 0.0.40
codegen_flags: <defaults>
</compile_context>

<pallas_src>
import jax
import jax.numpy as jnp
from jax.experimental import pallas as pl
from jax.experimental.pallas import tpu as pltpu


def _make_sh2signal_kernel(tg):
    """Build the kernel body for a static group-block size `tg`."""

    def kernel(sh_ref, x_ref, o_ref):
        # sh_ref: (V, C)       stationary pre-transposed SH->signal matrix
        # x_ref:  (TG, C, TN)  TG (b, ic) slices over one lane-dense spatial tile
        # o_ref:  (TG, V, TN)  signal values for the same slices / tile
        sh = sh_ref[...]  # hoisted: loaded once per grid step
        for g in range(tg):  # tg is small & static -> fully unrolled
            o_ref[g] = jnp.dot(
                sh,
                x_ref[g],
                preferred_element_type=jnp.float32,
                precision=jax.lax.Precision.HIGHEST,  # f32 parity w/ torch einsum
            ).astype(o_ref.dtype)

    return kernel


def _round_up(a, b):
    return -(-a // b) * b


def _pick_spatial_tile(N, max_tile_n):
    """Balanced lane-dense spatial tiling (no tiny ragged last tile)."""
    if N <= max_tile_n:
        return N, 1
    n_tiles = -(-N // max_tile_n)                 # cdiv
    tn = _round_up(-(-N // n_tiles), 128)         # round_up(cdiv(N, n_tiles), 128)
    n_tiles = -(-N // tn)
    return tn, n_tiles


def _pick_group_block(G, n_tiles, tg_cap):
    """Largest divisor of G <= tg_cap that keeps enough parallel grid steps."""
    divisors = [d for d in range(1, G + 1) if G % d == 0 and d <= max(1, tg_cap)]
    for min_steps in (4, 2, 1):  # prefer >=4 steps (v7x megacore), degrade gracefully
        ok = [d for d in divisors if (G // d) * n_tiles >= min_steps]
        if ok:
            return max(ok)
    return 1


def compute_signal(x, sh2s, *, max_tile_n=32768, target_step_bytes=4 << 20):
    """Pallas implementation of ComputeSignal.forward.

    Args:
      x:    [B, IC, C, X, Y, Z]
      sh2s: [C, V]
    Returns:
      [B, IC, V, X, Y, Z]  (dtype follows x.dtype)
    """
    B, IC, C, X, Y, Z = x.shape
    Cw, V = sh2s.shape
    assert C == Cw, "SH coefficient dims must match"

    G = B * IC
    N = X * Y * Z
    # Keep output in the activation dtype (bf16 in -> bf16 out cuts the
    # dominant store traffic); for f32 activations this matches PyTorch exactly.
    out_dtype = x.dtype
    x_bytes = jnp.dtype(x.dtype).itemsize
    o_bytes = jnp.dtype(out_dtype).itemsize

    # Contiguous-dim reshape (metadata only): [B, IC, C, X, Y, Z] -> [G, C, N].
    x3 = x.reshape(G, C, N)
    # Pre-transpose the tiny (C x V) matrix once in the wrapper -> (V, C).
    sh_t = jnp.transpose(jnp.asarray(sh2s), (1, 0))

    # Spatial (lane) tile + balanced ragged handling.
    tn, n_tiles = _pick_spatial_tile(N, max_tile_n)

    # Group-block size: amortize grid-step overhead over several (b, ic) slices
    # while keeping per-step HBM traffic near target and the grid parallel.
    bytes_per_group_step = (C * x_bytes + V * o_bytes) * tn
    tg_cap = max(1, target_step_bytes // bytes_per_group_step)
    tg = _pick_group_block(G, n_tiles, tg_cap)

    grid = (G // tg, n_tiles)

    cost = pl.CostEstimate(
        flops=2 * G * V * C * N,
        transcendentals=0,
        bytes_accessed=G * N * (C * x_bytes + V * o_bytes)
        + C * V * jnp.dtype(sh_t.dtype).itemsize,
    )

    out3 = pl.pallas_call(
        _make_sh2signal_kernel(tg),
        out_shape=jax.ShapeDtypeStruct((G, V, N), out_dtype),
        grid_spec=pltpu.PrefetchScalarGridSpec(
            num_scalar_prefetch=0,
            grid=grid,
            in_specs=[
                # Stationary SH->signal matrix: constant block index.
                pl.BlockSpec((V, C), lambda g, j: (0, 0)),
                # TG (b, ic) slices, one spatial tile.
                pl.BlockSpec((tg, C, tn), lambda g, j: (g, 0, j)),
            ],
            out_specs=pl.BlockSpec((tg, V, tn), lambda g, j: (g, 0, j)),
        ),
        compiler_params=pltpu.CompilerParams(
            dimension_semantics=("parallel", "parallel"),
            vmem_limit_bytes=32 << 20,  # safe on v5e/v6e/v7x; ~12 MiB actually used
        ),
        cost_estimate=cost,
    )(sh_t, x3)

    # Contiguous-dim reshape back: [G, V, N] -> [B, IC, V, X, Y, Z].
    return out3.reshape(B, IC, V, X, Y, Z)


if __name__ == "__main__":
    # Small shapes consistent with the module's forward.
    B, IC, C, X, Y, Z = 2, 4, 16, 8, 8, 8   # N = X*Y*Z = 512 (lane-dense)
    V = 32

    key = jax.random.PRNGKey(0)
    kx, ks = jax.random.split(key)
    x = jax.random.normal(kx, (B, IC, C, X, Y, Z), dtype=jnp.float32)
    # Deterministic synthetic SH2S buffer [C x V].
    sh2s = jax.random.normal(ks, (C, V), dtype=jnp.float32)

    out = jax.block_until_ready(compute_signal(x, sh2s))

    # Cross-check against a plain-JAX einsum reference (same f32 precision).
    ref = jnp.einsum(
        "ijklmn,kp->ijplmn", x, sh2s, precision=jax.lax.Precision.HIGHEST
    )
    assert out.shape == (B, IC, V, X, Y, Z)
    assert jnp.allclose(out, ref, atol=1e-4, rtol=1e-4)

    print("KERNEL_OK")
</pallas_src>

<mosaic_0001>
module attributes {stable_mosaic.version = 11 : i64} {
  func.func @kernel(%arg0: i32, %arg1: i32, %arg2: memref<32x16xf32, #tpu.memory_space<vmem>>, %arg3: memref<2x16x512xf32, #tpu.memory_space<vmem>>, %arg4: memref<2x32x512xf32, #tpu.memory_space<vmem>>) attributes {dimension_semantics = [#tpu.dimension_semantics<parallel>, #tpu.dimension_semantics<parallel>], iteration_bounds = array<i64: 4, 1>, scalar_prefetch = 0 : i64, scratch_operands = 0 : i64, tpu.core_type = #tpu.core_type<tc>, window_params = [{pipeline_mode = #tpu.pipeline_mode<synchronous>, transform_indices = @transform_0, window_bounds = array<i64: 32, 16>}, {transform_indices = @transform_1, window_bounds = array<i64: 2, 16, 512>}, {transform_indices = @transform_2, window_bounds = array<i64: 2, 32, 512>}]} {
    %c0 = arith.constant 0 : index
    %c0_0 = arith.constant 0 : index
    %0 = vector.load %arg2[%c0, %c0_0] : memref<32x16xf32, #tpu.memory_space<vmem>>, vector<32x16xf32>
    %c0_1 = arith.constant 0 : index
    %c0_2 = arith.constant 0 : index
    %c0_3 = arith.constant 0 : index
    %1 = vector.load %arg3[%c0_1, %c0_2, %c0_3] : memref<2x16x512xf32, #tpu.memory_space<vmem>>, vector<1x16x512xf32>
    %2 = vector.shape_cast %1 : vector<1x16x512xf32> to vector<16x512xf32>
    %cst = arith.constant dense<0.000000e+00> : vector<32x512xf32>
    %3 = tpu.matmul %0, %2, %cst {dimension_numbers = #tpu.dot_dimension_numbers<[1], [0], [0], [1], [0, 0, 1, 1], [], []>, precision = #tpu.contract_precision<fp32>} : vector<32x16xf32>, vector<16x512xf32>, vector<32x512xf32> -> vector<32x512xf32>
    %c0_4 = arith.constant 0 : index
    %c0_5 = arith.constant 0 : index
    %c0_6 = arith.constant 0 : index
    %4 = vector.load %arg4[%c0_4, %c0_5, %c0_6] : memref<2x32x512xf32, #tpu.memory_space<vmem>>, vector<1x32x512xf32>
    %5 = vector.shape_cast %4 : vector<1x32x512xf32> to vector<32x512xf32>
    %6 = vector.shape_cast %3 : vector<32x512xf32> to vector<1x32x512xf32>
    tpu.vector_store %arg4[%c0_4, %c0_5, %c0_6], %6 {strides = array<i32>} : memref<2x32x512xf32, #tpu.memory_space<vmem>>, vector<1x32x512xf32>,
    %c1 = arith.constant 1 : index
    %c0_7 = arith.constant 0 : index
    %c0_8 = arith.constant 0 : index
    %7 = vector.load %arg3[%c1, %c0_7, %c0_8] : memref<2x16x512xf32, #tpu.memory_space<vmem>>, vector<1x16x512xf32>
    %8 = vector.shape_cast %7 : vector<1x16x512xf32> to vector<16x512xf32>
    %cst_9 = arith.constant dense<0.000000e+00> : vector<32x512xf32>
    %9 = tpu.matmul %0, %8, %cst_9 {dimension_numbers = #tpu.dot_dimension_numbers<[1], [0], [0], [1], [0, 0, 1, 1], [], []>, precision = #tpu.contract_precision<fp32>} : vector<32x16xf32>, vector<16x512xf32>, vector<32x512xf32> -> vector<32x512xf32>
    %c1_10 = arith.constant 1 : index
    %c0_11 = arith.constant 0 : index
    %c0_12 = arith.constant 0 : index
    %10 = vector.load %arg4[%c1_10, %c0_11, %c0_12] : memref<2x32x512xf32, #tpu.memory_space<vmem>>, vector<1x32x512xf32>
    %11 = vector.shape_cast %10 : vector<1x32x512xf32> to vector<32x512xf32>
    %12 = vector.shape_cast %9 : vector<32x512xf32> to vector<1x32x512xf32>
    tpu.vector_store %arg4[%c1_10, %c0_11, %c0_12], %12 {strides = array<i32>} : memref<2x32x512xf32, #tpu.memory_space<vmem>>, vector<1x32x512xf32>,
    return
  }
  func.func @transform_0(%arg0: i32, %arg1: i32) -> (i32, i32) {
    %c0_i32 = arith.constant 0 : i32
    %c0_i32_0 = arith.constant 0 : i32
    %c0_i32_1 = arith.constant 0 : i32
    return %c0_i32, %c0_i32_0 : i32, i32
  }
  func.func @transform_1(%arg0: i32, %arg1: i32) -> (i32, i32, i32) {
    %c0_i32 = arith.constant 0 : i32
    %c0_i32_0 = arith.constant 0 : i32
    return %arg0, %c0_i32, %arg1 : i32, i32, i32
  }
  func.func @transform_2(%arg0: i32, %arg1: i32) -> (i32, i32, i32) {
    %c0_i32 = arith.constant 0 : i32
    %c0_i32_0 = arith.constant 0 : i32
    return %arg0, %c0_i32, %arg1 : i32, i32, i32
  }
}

</mosaic_0001>

<llo_original>
// kernel: tpu_custom_call.1
$region0: #{tpu_custom_call.1}
  #allocation0 [shape = 'u32[]', space=smem, size = 0x4, offset = 0x4, fixed_abs, tag = 'smem constant byte address 0x4 - core index']
  #allocation1 [shape = 'u32[144,128]{1,0:T(1,128)}', space=vmem, size = 0x12000, scoped, tag = 'internal scratch']
  %s0 = inlined_call_operand.vmem [shape: f32[32,16], index: 0, kind: input, shape index: {}]
  %s1 = inlined_call_operand.hbm [shape: f32[8,16,512], index: 1, kind: input, shape index: {}]
  %s2 = inlined_call_operand.hbm [shape: f32[8,32,512], index: 2, kind: output, shape index: {}]
  %s3 = sld [smem:[#allocation0]]
  $region45: #{tpu_custom_call.1} parent=0
    _
  %s5 = ssub.s32 1, %s3
  %s6 = scalar_select 0, %s5, %s3
  $region1: #{tpu_custom_call.1} parent=0
    #allocation2 [shape = 'u8[131072]{0}', space=vmem, size = 0x20000, scoped, tag = 'input window, operand 1']
    #allocation3 [shape = 's32[2]{0}', space=sflag, size = 0x8, scoped, tag = 'scoped memory for tpu_custom_call.1']
    #allocation4 [shape = 's32[2]{0}', space=sflag, size = 0x8, scoped, tag = 'scoped memory for tpu_custom_call.1']
    #allocation5 [shape = 'u8[262144]{0}', space=vmem, size = 0x40000, scoped, tag = 'output window, operand 0']
    %7 = vsyncpa [#allocation3], 0
    %s8 = scalar_lea.sflag [#allocation3], 1
    %9 = vsyncpa %s8, 0
    %10 = vsyncpa [#allocation4], 0
    %s11 = scalar_lea.sflag [#allocation4], 1
    %12 = vsyncpa %s11, 0
    loop: start=0, step=1, limit=6
    $region2: #{tpu_custom_call.1} parent=1 // loop_pre_header
      _
    $region3: #{tpu_custom_call.1} parent=1 // loop_header
      %s14 = sphi 0, %s18
      %p15 = scmp.ge.s32.totalorder %s14, 6
      %s21 = sphi 0, %s33
      %s22 = sphi 0, %s29
      %s23 = sphi 0, %s21
      %s24 = sphi 0, %s22
      %s25 = sphi 0, %s23
      %s26 = sphi 0, %s24
      %s34 = sphi 0, %s34
      %s36 = sphi 0, %s34
      %s37 = sphi 0, %s36
      %s51 = sphi 0, %s37
      %s59 = sphi 0, %s61
      %s62 = sphi 0, %s59
      %s63 = sphi 0, %s62
      %s79 = sphi 0, %s63
      %s87 = sphi 0, %s89
      %s90 = sphi 0, %s87
      %s91 = sphi 0, %s90
      %s107 = sphi 0, %s91
    $region4: #{tpu_custom_call.1} parent=1 // loop_header_branch
      %17 = sbr.rel (%p15) target = $region8
    $region5: #{tpu_custom_call.1} parent=1 // loop_body
      %s19 = ssub.s32 %s14, 1
      %s20 = ssub.s32 %s14, 2
      %s27 = sadd.s32 1, %s22
      %p28 = scmp.ge.s32.totalorder %s27, 1
      %s29 = scalar_select %p28, 0, %s27
      %s30 = sadd.s32 1, %s21
      %s31 = scalar_select %p28, %s30, %s21
      %p32 = scmp.ge.s32.totalorder %s31, 4
      %s33 = scalar_select %p32, 0, %s31
      %s35 = sadd.s32 %s34, 1
      %p38 = scmp.eq.s32.totalorder %s14, 3
      %p39 = scmp.ne.s32.totalorder %s34, %s36
      %p40 = scmp.eq.s32.totalorder %s14, 0
      %p41 = por %p39, %p40
      %p42 = scmp.ne.s32.totalorder %s34, %s36
      %p43 = scmp.eq.s32.totalorder %s19, 3
      %p44 = por %p42, %p43
      %p45 = scmp.ne.s32.totalorder %s36, %s37
      %p46 = scmp.eq.s32.totalorder %s19, 0
      %p47 = por %p45, %p46
      %p48 = scmp.ne.s32.totalorder %s36, %s37
      %p49 = scmp.eq.s32.totalorder %s20, 3
      %p50 = por %p48, %p49
      %p52 = scmp.ne.s32.totalorder %s37, %s51
      %p53 = scmp.eq.s32.totalorder %s20, 0
      %p54 = por %p52, %p53
      %s55 = ssub.s32 %s21, %s33
      %s56 = ssub.s32 %s22, %s29
      %s57 = sor.u32 %s55, %s56
      %p58 = scmp.eq.s32.totalorder %s57, 0
      %s60 = sadd.s32 %s59, 1
      %s61 = scalar_select %p58, %s59, %s60
      %p64 = pneg %p58
      %p65 = scmp.eq.s32.totalorder %s14, 3
      %p66 = por %p64, %p65
      %p67 = scmp.ne.s32.totalorder %s59, %s62
      %p68 = scmp.eq.s32.totalorder %s14, 0
      %p69 = por %p67, %p68
      %p70 = scmp.ne.s32.totalorder %s59, %s62
      %p71 = scmp.eq.s32.totalorder %s19, 3
      %p72 = por %p70, %p71
      %p73 = scmp.ne.s32.totalorder %s62, %s63
      %p74 = scmp.eq.s32.totalorder %s19, 0
      %p75 = por %p73, %p74
      %p76 = scmp.ne.s32.totalorder %s62, %s63
      %p77 = scmp.eq.s32.totalorder %s20, 3
      %p78 = por %p76, %p77
      %p80 = scmp.ne.s32.totalorder %s63, %s79
      %p81 = scmp.eq.s32.totalorder %s20, 0
      %p82 = por %p80, %p81
      %s83 = ssub.s32 %s21, %s33
      %s84 = ssub.s32 %s22, %s29
      %s85 = sor.u32 %s83, %s84
      %p86 = scmp.eq.s32.totalorder %s85, 0
      %s88 = sadd.s32 %s87, 1
      %s89 = scalar_select %p86, %s87, %s88
      %p92 = pneg %p86
      %p93 = scmp.eq.s32.totalorder %s14, 3
      %p94 = por %p92, %p93
      %p95 = scmp.ne.s32.totalorder %s87, %s90
      %p96 = scmp.eq.s32.totalorder %s14, 0
      %p97 = por %p95, %p96
      %p98 = scmp.ne.s32.totalorder %s87, %s90
      %p99 = scmp.eq.s32.totalorder %s19, 3
      %p100 = por %p98, %p99
      %p101 = scmp.ne.s32.totalorder %s90, %s91
      %p102 = scmp.eq.s32.totalorder %s19, 0
      %p103 = por %p101, %p102
      %p104 = scmp.ne.s32.totalorder %s90, %s91
      %p105 = scmp.eq.s32.totalorder %s20, 3
      %p106 = por %p104, %p105
      %p108 = scmp.ne.s32.totalorder %s91, %s107
      %p109 = scmp.eq.s32.totalorder %s20, 0
      %p110 = por %p108, %p109
      %p111 = scmp.le.s32.totalorder 1, %s14
      %p112 = scmp.lt.s32.totalorder %s14, 5
      %p113 = pnand %p111, %p112
      %p114 = pneg %p113
      // Predicated region
      $region9: #{tpu_custom_call.1} parent=5 // pred_check
        _
      $region10: #{tpu_custom_call.1} parent=5 // pred_check_branch
        %116 = sbr.rel (%p113) target = $region12
      $region11: #{tpu_custom_call.1} parent=5 // pred_region
        %s117 = ssub.s32 %s14, 1
        // Predicated region
        $region13: #{tpu_custom_call.1} parent=11 // pred_check
          %p118 = pneg %p47
        $region14: #{tpu_custom_call.1} parent=11 // pred_check_branch
          %120 = sbr.rel (%p118) target = $region16
        $region15: #{tpu_custom_call.1} parent=11 // pred_region
          _
        $region16: #{tpu_custom_call.1} parent=11 // pred_fallthru
          _
      $region12: #{tpu_custom_call.1} parent=5 // pred_fallthru
        _
      %p121 = scmp.lt.s32.totalorder %s14, 4
      // Predicated region
      $region17: #{tpu_custom_call.1} parent=5 // pred_check
        %p122 = pneg %p121
      $region18: #{tpu_custom_call.1} parent=5 // pred_check_branch
        %124 = sbr.rel (%p122) target = $region20
      $region19: #{tpu_custom_call.1} parent=5 // pred_region
        // Predicated region
        $region21: #{tpu_custom_call.1} parent=19 // pred_check
          %p125 = pneg %p69
        $region22: #{tpu_custom_call.1} parent=19 // pred_check_branch
          %127 = sbr.rel (%p125) target = $region24
        $region23: #{tpu_custom_call.1} parent=19 // pred_region
          %s128 = sand.u32 %s59, 1
          %s129 = scalar_lea.sflag [#allocation3], %s128
          %s130 = sand.u32 %s59, 1
          %s131 = smul.addr %s130, 128
          %s132 = scalar_lea.vmem [#allocation2], %s131
          %s133 = smul.u32 2, %s21
          %s134 = smul.u32 4, %s22
          %s136 = ssub.s32 2048, 2048
          %137 = vsyncadd %s129, %s136
          %s138 = smul.addr %s133, 8
          %s139 = sadd.s32 %s134, %s138
          %s140 = smul.addr %s139, 128
          %s141 = scalar_lea.hbm %s1, %s140
          %s142 = sshll.u32 %s132, 4
          %s143 = int_to_ptr.vmem [resolvable:$true] %s142
          %148 = dma.hbm_to_vmem [thread:$0]  %s141, 2048, %s143, %s129, 512, 512, 32
        $region24: #{tpu_custom_call.1} parent=19 // pred_fallthru
          _
      $region20: #{tpu_custom_call.1} parent=5 // pred_fallthru
        _
      %p149 = scmp.le.s32.totalorder 1, %s14
      %p150 = scmp.lt.s32.totalorder %s14, 5
      %p151 = pnand %p149, %p150
      %p152 = pneg %p151
      // Predicated region
      $region25: #{tpu_custom_call.1} parent=5 // pred_check
        _
      $region26: #{tpu_custom_call.1} parent=5 // pred_check_branch
        %154 = sbr.rel (%p151) target = $region28
      $region27: #{tpu_custom_call.1} parent=5 // pred_region
        %s155 = ssub.s32 %s14, 1
        %s156 = sand.u32 %s62, 1
        %s157 = scalar_lea.sflag [#allocation3], %s156
        %s158 = sand.u32 %s62, 1
        %s159 = smul.addr %s158, 128
        %s160 = scalar_lea.vmem [#allocation2], %s159
        // Predicated region
        $region29: #{tpu_custom_call.1} parent=27 // pred_check
          %p161 = pneg %p75
        $region30: #{tpu_custom_call.1} parent=27 // pred_check_branch
          %163 = sbr.rel (%p161) target = $region32
        $region31: #{tpu_custom_call.1} parent=27 // pred_region
          %164 = dma.done %s157, 2048
        $region32: #{tpu_custom_call.1} parent=27 // pred_fallthru
          _
        %p165 = pneg %p47
        %p166 = pneg %p44
        %s167 = sand.u32 %s62, 1
        %s168 = scalar_lea.sflag [#allocation3], %s167
        %s169 = sand.u32 %s62, 1
        %s170 = smul.addr %s169, 128
        %s171 = scalar_lea.vmem [#allocation2], %s170
        %p172 = pneg %p75
        %p173 = pneg %p72
        %p174 = pneg %p103
        %p175 = pneg %p100
        %s176 = sand.u32 %s90, 1
        %s177 = scalar_lea.sflag [#allocation4], %s176
        %s178 = sand.u32 %s90, 1
        %s179 = smul.addr %s178, 256
        %s180 = scalar_lea.vmem [#allocation5], %s179
        %s181 = smul.u32 2, %s23
        %s182 = smul.u32 4, %s24
        %s183 = smul.u32 2, %s23
        %s184 = smul.u32 4, %s24
        %v185 = vld [vmem:[%s0] sm:$0xff]
        %v186 = vld [vmem:[%s0 + $0x8] sm:$0xff]
        %v187 = vld [vmem:[%s0 + $0x10] sm:$0xff]
        %v188 = vld [vmem:[%s0 + $0x18] sm:$0xff]
        %v189 = vld [vmem:[%s160] sm:$0xff]
        %v190 = vld [vmem:[%s160 + $0x8] sm:$0xff]
        %v191 = vld [vmem:[%s160 + $0x10] sm:$0xff]
        %v192 = vld [vmem:[%s160 + $0x18] sm:$0xff]
        %v193 = vld [vmem:[%s160 + $0x20] sm:$0xff]
        %v194 = vld [vmem:[%s160 + $0x28] sm:$0xff]
        %v195 = vld [vmem:[%s160 + $0x30] sm:$0xff]
        %v196 = vld [vmem:[%s160 + $0x38] sm:$0xff]
        %vm197 = vcmask 130048
        %v199 = vsel %vm197, %v185, 0
        %v202 = vsel %vm197, %v186, 0
        %v205 = vsel %vm197, %v187, 0
        %v208 = vsel %vm197, %v188, 0
        %v210 = vand.u32 %v190, 4294901760
        %211 = vmatprep.subr.mxu0 %v210
        %v212 = vand.u32 %v189, 4294901760
        %213 = vmatpush1.msra.mxu0 %v212
        %v214 = vand.u32 %v194, 4294901760
        %215 = vmatprep.subr.mxu0 %v214
        %v216 = vand.u32 %v193, 4294901760
        %217 = vmatpush1.msra.mxu0 %v216
        %218 = vmatprep.subr.mxu0 0.0
        %219 = vmatpush1.msra.mxu0 0.0
        %220 = vmatprep.subr.mxu0 0.0
        %221 = vmatpush1.msra.mxu0 0.0
        %222 = vmatprep.subr.mxu0 0.0
        %223 = vmatpush1.msra.mxu0 0.0
        %224 = vmatprep.subr.mxu0 0.0
        %225 = vmatpush1.msra.mxu0 0.0
        %226 = vmatprep.subr.mxu0 0.0
        %227 = vmatpush1.msra.mxu0 0.0
        %228 = vmatprep.subr.mxu0 0.0
        %229 = vmatpush1.msra.mxu0 0.0
        %230 = vmatprep.subr.mxu0 0.0
        %231 = vmatpush1.msra.mxu0 0.0
        %232 = vmatprep.subr.mxu0 0.0
        %233 = vmatpush1.msra.mxu0 0.0
        %234 = vmatprep.subr.mxu0 0.0
        %235 = vmatpush1.msra.mxu0 0.0
        %236 = vmatprep.subr.mxu0 0.0
        %237 = vmatpush1.msra.mxu0 0.0
        %238 = vmatprep.subr.mxu0 0.0
        %239 = vmatpush1.msra.mxu0 0.0
        %240 = vmatprep.subr.mxu0 0.0
        %241 = vmatpush1.msra.mxu0 0.0
        %242 = vmatprep.subr.mxu0 0.0
        %243 = vmatpush1.msra.mxu0 0.0
        %244 = vmatprep.subr.mxu0 0.0
        %245 = vmatpush1.msra.mxu0 0.0
        %246 = vmatprep.subr.mxu0 0.0
        %247 = vmatpush1.msra.mxu0 0.0
        %248 = vmatprep.subr.mxu0 0.0
        %249 = vmatpush1.msra.mxu0 0.0
        %250 = vmatprep.subr.mxu0 0.0
        %251 = vmatpush1.msra.mxu0 0.0
        %252 = vmatprep.subr.mxu0 0.0
        %253 = vmatpush1.msra.mxu0 0.0
        %254 = vmatprep.subr.mxu0 0.0
        %255 = vmatpush1.msra.mxu0 0.0
        %256 = vmatprep.subr.mxu0 0.0
        %257 = vmatpush1.msra.mxu0 0.0
        %258 = vmatprep.subr.mxu0 0.0
        %259 = vmatpush1.msra.mxu0 0.0
        %260 = vmatprep.subr.mxu0 0.0
        %261 = vmatpush1.msra.mxu0 0.0
        %262 = vmatprep.subr.mxu0 0.0
        %263 = vmatpush1.msra.mxu0 0.0
        %264 = vmatprep.subr.mxu0 0.0
        %265 = vmatpush1.msra.mxu0 0.0
        %266 = vmatprep.subr.mxu0 0.0
        %267 = vmatpush1.msra.mxu0 0.0
        %268 = vmatprep.subr.mxu0 0.0
        %269 = vmatpush1.msra.mxu0 0.0
        %270 = vmatprep.subr.mxu0 0.0
        %271 = vmatpush1.msra.mxu0 0.0
        %272 = vmatprep.subr.mxu0 0.0
        %273 = vmatpush1.msra.mxu0 0.0
        %274 = vmatprep.subr.mxu0 0.0
        %275 = vmatpush1.msra.mxu0 0.0
        %276 = vmatprep.subr.mxu0 0.0
        %277 = vmatpush1.msra.mxu0 0.0
        %278 = vmatprep.mubr.f32.mxu0 0.0
        %v279 = vand.u32 %v199, 4294901760
        %v280 = vsub.f32 %v199, %v279
        %v281 = vand.u32 %v280, 4294901760
        %v282 = vsub.f32 %v280, %v281
        %v283 = vand.u32 %v282, 4294901760
        %284 = vmatmul.mubr.f32.gmra.mrb[0].mxu0 %v283
        %v285 = vpop.f32.mrb[0].mxu0
        %v286 = vadd.f32 0.0, %v285
        %v287 = vpop.f32.mrb[0].mxu0
        %v288 = vadd.f32 0.0, %v287
        %289 = vmatprep.mubr.f32.mxu0 0.0
        %v290 = vand.u32 %v202, 4294901760
        %v291 = vsub.f32 %v202, %v290
        %v292 = vand.u32 %v291, 4294901760
        %v293 = vsub.f32 %v291, %v292
        %v294 = vand.u32 %v293, 4294901760
        %295 = vmatmul.mubr.f32.gmra.mrb[0].mxu0 %v294
        %v296 = vpop.f32.mrb[0].mxu0
        %v297 = vadd.f32 0.0, %v296
        %v298 = vpop.f32.mrb[0].mxu0
        %v299 = vadd.f32 0.0, %v298
        %300 = vmatprep.mubr.f32.mxu0 0.0
        %v301 = vand.u32 %v205, 4294901760
        %v302 = vsub.f32 %v205, %v301
        %v303 = vand.u32 %v302, 4294901760
        %v304 = vsub.f32 %v302, %v303
        %v305 = vand.u32 %v304, 4294901760
        %306 = vmatmul.mubr.f32.gmra.mrb[0].mxu0 %v305
        %v307 = vpop.f32.mrb[0].mxu0
        %v308 = vadd.f32 0.0, %v307
        %v309 = vpop.f32.mrb[0].mxu0
        %v310 = vadd.f32 0.0, %v309
        %311 = vmatprep.mubr.f32.mxu0 0.0
        %v312 = vand.u32 %v208, 4294901760
        %v313 = vsub.f32 %v208, %v312
        %v314 = vand.u32 %v313, 4294901760
        %v315 = vsub.f32 %v313, %v314
        %v316 = vand.u32 %v315, 4294901760
        %317 = vmatmul.mubr.f32.gmra.mrb[0].mxu0 %v316
        %v318 = vpop.f32.mrb[0].mxu0
        %v319 = vadd.f32 0.0, %v318
        %v320 = vpop.f32.mrb[0].mxu0
        %v321 = vadd.f32 0.0, %v320
        %322 = vdwg.mxu0
        %v323 = vand.u32 %v190, 4294901760
        %v324 = vsub.f32 %v190, %v323
        %v325 = vand.u32 %v324, 4294901760
        %v326 = vsub.f32 %v324, %v325
        %v327 = vand.u32 %v326, 4294901760
        %328 = vmatprep.subr.mxu0 %v327
        %v329 = vand.u32 %v189, 4294901760
        %v330 = vsub.f32 %v189, %v329
        %v331 = vand.u32 %v330, 4294901760
        %v332 = vsub.f32 %v330, %v331
        %v333 = vand.u32 %v332, 4294901760
        %334 = vmatpush1.msra.mxu0 %v333
        %v335 = vand.u32 %v194, 4294901760
        %v336 = vsub.f32 %v194, %v335
        %v337 = vand.u32 %v336, 4294901760
        %v338 = vsub.f32 %v336, %v337
        %v339 = vand.u32 %v338, 4294901760
        %340 = vmatprep.subr.mxu0 %v339
        %v341 = vand.u32 %v193, 4294901760
        %v342 = vsub.f32 %v193, %v341
        %v343 = vand.u32 %v342, 4294901760
        %v344 = vsub.f32 %v342, %v343
        %v345 = vand.u32 %v344, 4294901760
        %346 = vmatpush1.msra.mxu0 %v345
        %347 = vmatprep.subr.mxu0 0.0
        %348 = vmatpush1.msra.mxu0 0.0
        %349 = vmatprep.subr.mxu0 0.0
        %350 = vmatpush1.msra.mxu0 0.0
        %351 = vmatprep.subr.mxu0 0.0
        %352 = vmatpush1.msra.mxu0 0.0
        %353 = vmatprep.subr.mxu0 0.0
        %354 = vmatpush1.msra.mxu0 0.0
        %355 = vmatprep.subr.mxu0 0.0
        %356 = vmatpush1.msra.mxu0 0.0
        %357 = vmatprep.subr.mxu0 0.0
        %358 = vmatpush1.msra.mxu0 0.0
        %359 = vmatprep.subr.mxu0 0.0
        %360 = vmatpush1.msra.mxu0 0.0
        %361 = vmatprep.subr.mxu0 0.0
        %362 = vmatpush1.msra.mxu0 0.0
        %363 = vmatprep.subr.mxu0 0.0
        %364 = vmatpush1.msra.mxu0 0.0
        %365 = vmatprep.subr.mxu0 0.0
        %366 = vmatpush1.msra.mxu0 0.0
        %367 = vmatprep.subr.mxu0 0.0
        %368 = vmatpush1.msra.mxu0 0.0
        %369 = vmatprep.subr.mxu0 0.0
        %370 = vmatpush1.msra.mxu0 0.0
        %371 = vmatprep.subr.mxu0 0.0
        %372 = vmatpush1.msra.mxu0 0.0
        %373 = vmatprep.subr.mxu0 0.0
        %374 = vmatpush1.msra.mxu0 0.0
        %375 = vmatprep.subr.mxu0 0.0
        %376 = vmatpush1.msra.mxu0 0.0
        %377 = vmatprep.subr.mxu0 0.0
        %378 = vmatpush1.msra.mxu0 0.0
        %379 = vmatprep.subr.mxu0 0.0
        %380 = vmatpush1.msra.mxu0 0.0
        %381 = vmatprep.subr.mxu0 0.0
        %382 = vmatpush1.msra.mxu0 0.0
        %383 = vmatprep.subr.mxu0 0.0
        %384 = vmatpush1.msra.mxu0 0.0
        %385 = vmatprep.subr.mxu0 0.0
        %386 = vmatpush1.msra.mxu0 0.0
        %387 = vmatprep.subr.mxu0 0.0
        %388 = vmatpush1.msra.mxu0 0.0
        %389 = vmatprep.subr.mxu0 0.0
        %390 = vmatpush1.msra.mxu0 0.0
        %391 = vmatprep.subr.mxu0 0.0
        %392 = vmatpush1.msra.mxu0 0.0
        %393 = vmatprep.subr.mxu0 0.0
        %394 = vmatpush1.msra.mxu0 0.0
        %395 = vmatprep.subr.mxu0 0.0
        %396 = vmatpush1.msra.mxu0 0.0
        %397 = vmatprep.subr.mxu0 0.0
        %398 = vmatpush1.msra.mxu0 0.0
        %399 = vmatprep.subr.mxu0 0.0
        %400 = vmatpush1.msra.mxu0 0.0
        %401 = vmatprep.subr.mxu0 0.0
        %402 = vmatpush1.msra.mxu0 0.0
        %403 = vmatprep.subr.mxu0 0.0
        %404 = vmatpush1.msra.mxu0 0.0
        %405 = vmatprep.subr.mxu0 0.0
        %406 = vmatpush1.msra.mxu0 0.0
        %407 = vmatprep.mubr.f32.mxu0 0.0
        %v408 = vand.u32 %v199, 4294901760
        %409 = vmatmul.mubr.f32.gmra.mrb[0].mxu0 %v408
        %v410 = vpop.f32.mrb[0].mxu0
        %v411 = vadd.f32 %v286, %v410
        %v412 = vpop.f32.mrb[0].mxu0
        %v413 = vadd.f32 %v288, %v412
        %414 = vmatprep.mubr.f32.mxu0 0.0
        %v415 = vand.u32 %v202, 4294901760
        %416 = vmatmul.mubr.f32.gmra.mrb[0].mxu0 %v415
        %v417 = vpop.f32.mrb[0].mxu0
        %v418 = vadd.f32 %v297, %v417
        %v419 = vpop.f32.mrb[0].mxu0
        %v420 = vadd.f32 %v299, %v419
        %421 = vmatprep.mubr.f32.mxu0 0.0
        %v422 = vand.u32 %v205, 4294901760
        %423 = vmatmul.mubr.f32.gmra.mrb[0].mxu0 %v422
        %v424 = vpop.f32.mrb[0].mxu0
        %v425 = vadd.f32 %v308, %v424
        %v426 = vpop.f32.mrb[0].mxu0
        %v427 = vadd.f32 %v310, %v426
        %428 = vmatprep.mubr.f32.mxu0 0.0
        %v429 = vand.u32 %v208, 4294901760
        %430 = vmatmul.mubr.f32.gmra.mrb[0].mxu0 %v429
        %v431 = vpop.f32.mrb[0].mxu0
        %v432 = vadd.f32 %v319, %v431
        %v433 = vpop.f32.mrb[0].mxu0
        %v434 = vadd.f32 %v321, %v433
        %435 = vdwg.mxu0
        %v436 = vand.u32 %v190, 4294901760
        %v437 = vsub.f32 %v190, %v436
        %438 = vmatprep.subr.mxu0 %v437
        %v439 = vand.u32 %v189, 4294901760
        %v440 = vsub.f32 %v189, %v439
        %441 = vmatpush1.msra.mxu0 %v440
        %v442 = vand.u32 %v194, 4294901760
        %v443 = vsub.f32 %v194, %v442
        %444 = vmatprep.subr.mxu0 %v443
        %v445 = vand.u32 %v193, 4294901760
        %v446 = vsub.f32 %v193, %v445
        %447 = vmatpush1.msra.mxu0 %v446
        %448 = vmatprep.subr.mxu0 0.0
        %449 = vmatpush1.msra.mxu0 0.0
        %450 = vmatprep.subr.mxu0 0.0
        %451 = vmatpush1.msra.mxu0 0.0
        %452 = vmatprep.subr.mxu0 0.0
        %453 = vmatpush1.msra.mxu0 0.0
        %454 = vmatprep.subr.mxu0 0.0
        %455 = vmatpush1.msra.mxu0 0.0
        %456 = vmatprep.subr.mxu0 0.0
        %457 = vmatpush1.msra.mxu0 0.0
        %458 = vmatprep.subr.mxu0 0.0
        %459 = vmatpush1.msra.mxu0 0.0
        %460 = vmatprep.subr.mxu0 0.0
        %461 = vmatpush1.msra.mxu0 0.0
        %462 = vmatprep.subr.mxu0 0.0
        %463 = vmatpush1.msra.mxu0 0.0
        %464 = vmatprep.subr.mxu0 0.0
        %465 = vmatpush1.msra.mxu0 0.0
        %466 = vmatprep.subr.mxu0 0.0
        %467 = vmatpush1.msra.mxu0 0.0
        %468 = vmatprep.subr.mxu0 0.0
        %469 = vmatpush1.msra.mxu0 0.0
        %470 = vmatprep.subr.mxu0 0.0
        %471 = vmatpush1.msra.mxu0 0.0
        %472 = vmatprep.subr.mxu0 0.0
        %473 = vmatpush1.msra.mxu0 0.0
        %474 = vmatprep.subr.mxu0 0.0
        %475 = vmatpush1.msra.mxu0 0.0
        %476 = vmatprep.subr.mxu0 0.0
        %477 = vmatpush1.msra.mxu0 0.0
        %478 = vmatprep.subr.mxu0 0.0
        %479 = vmatpush1.msra.mxu0 0.0
        %480 = vmatprep.subr.mxu0 0.0
        %481 = vmatpush1.msra.mxu0 0.0
        %482 = vmatprep.subr.mxu0 0.0
        %483 = vmatpush1.msra.mxu0 0.0
        %484 = vmatprep.subr.mxu0 0.0
        %485 = vmatpush1.msra.mxu0 0.0
        %486 = vmatprep.subr.mxu0 0.0
        %487 = vmatpush1.msra.mxu0 0.0
        %488 = vmatprep.subr.mxu0 0.0
        %489 = vmatpush1.msra.mxu0 0.0
        %490 = vmatprep.subr.mxu0 0.0
        %491 = vmatpush1.msra.mxu0 0.0
        %492 = vmatprep.subr.mxu0 0.0
        %493 = vmatpush1.msra.mxu0 0.0
        %494 = vmatprep.subr.mxu0 0.0
        %495 = vmatpush1.msra.mxu0 0.0
        %496 = vmatprep.subr.mxu0 0.0
        %497 = vmatpush1.msra.mxu0 0.0
        %498 = vmatprep.subr.mxu0 0.0
        %499 = vmatpush1.msra.mxu0 0.0
        %500 = vmatprep.subr.mxu0 0.0
        %501 = vmatpush1.msra.mxu0 0.0
        %502 = vmatprep.subr.mxu0 0.0
        %503 = vmatpush1.msra.mxu0 0.0
        %504 = vmatprep.subr.mxu0 0.0
        %505 = vmatpush1.msra.mxu0 0.0
        %506 = vmatprep.subr.mxu0 0.0
        %507 = vmatpush1.msra.mxu0 0.0
        %508 = vmatprep.mubr.f32.mxu0 0.0
        %v509 = vand.u32 %v199, 4294901760
        %v510 = vsub.f32 %v199, %v509
        %511 = vmatmul.mubr.f32.gmra.mrb[0].mxu0 %v510
        %v512 = vpop.f32.mrb[0].mxu0
        %v513 = vadd.f32 %v411, %v512
        %v514 = vpop.f32.mrb[0].mxu0
        %v515 = vadd.f32 %v413, %v514
        %516 = vmatprep.mubr.f32.mxu0 0.0
        %v517 = vand.u32 %v202, 4294901760
        %v518 = vsub.f32 %v202, %v517
        %519 = vmatmul.mubr.f32.gmra.mrb[0].mxu0 %v518
        %v520 = vpop.f32.mrb[0].mxu0
        %v521 = vadd.f32 %v418, %v520
        %v522 = vpop.f32.mrb[0].mxu0
        %v523 = vadd.f32 %v420, %v522
        %524 = vmatprep.mubr.f32.mxu0 0.0
        %v525 = vand.u32 %v205, 4294901760
        %v526 = vsub.f32 %v205, %v525
        %527 = vmatmul.mubr.f32.gmra.mrb[0].mxu0 %v526
        %v528 = vpop.f32.mrb[0].mxu0
        %v529 = vadd.f32 %v425, %v528
        %v530 = vpop.f32.mrb[0].mxu0
        %v531 = vadd.f32 %v427, %v530
        %532 = vmatprep.mubr.f32.mxu0 0.0
        %v533 = vand.u32 %v208, 4294901760
        %v534 = vsub.f32 %v208, %v533
        %535 = vmatmul.mubr.f32.gmra.mrb[0].mxu0 %v534
        %v536 = vpop.f32.mrb[0].mxu0
        %v537 = vadd.f32 %v432, %v536
        %v538 = vpop.f32.mrb[0].mxu0
        %v539 = vadd.f32 %v434, %v538
        %540 = vdwg.mxu0
        %v541 = vand.u32 %v190, 4294901760
        %542 = vmatprep.subr.mxu0 %v541
        %v543 = vand.u32 %v189, 4294901760
        %544 = vmatpush1.msra.mxu0 %v543
        %v545 = vand.u32 %v194, 4294901760
        %546 = vmatprep.subr.mxu0 %v545
        %v547 = vand.u32 %v193, 4294901760
        %548 = vmatpush1.msra.mxu0 %v547
        %549 = vmatprep.subr.mxu0 0.0
        %550 = vmatpush1.msra.mxu0 0.0
        %551 = vmatprep.subr.mxu0 0.0
        %552 = vmatpush1.msra.mxu0 0.0
        %553 = vmatprep.subr.mxu0 0.0
        %554 = vmatpush1.msra.mxu0 0.0
        %555 = vmatprep.subr.mxu0 0.0
        %556 = vmatpush1.msra.mxu0 0.0
        %557 = vmatprep.subr.mxu0 0.0
        %558 = vmatpush1.msra.mxu0 0.0
        %559 = vmatprep.subr.mxu0 0.0
        %560 = vmatpush1.msra.mxu0 0.0
        %561 = vmatprep.subr.mxu0 0.0
        %562 = vmatpush1.msra.mxu0 0.0
        %563 = vmatprep.subr.mxu0 0.0
        %564 = vmatpush1.msra.mxu0 0.0
        %565 = vmatprep.subr.mxu0 0.0
        %566 = vmatpush1.msra.mxu0 0.0
        %567 = vmatprep.subr.mxu0 0.0
        %568 = vmatpush1.msra.mxu0 0.0
        %569 = vmatprep.subr.mxu0 0.0
        %570 = vmatpush1.msra.mxu0 0.0
        %571 = vmatprep.subr.mxu0 0.0
        %572 = vmatpush1.msra.mxu0 0.0
        %573 = vmatprep.subr.mxu0 0.0
        %574 = vmatpush1.msra.mxu0 0.0
        %575 = vmatprep.subr.mxu0 0.0
        %576 = vmatpush1.msra.mxu0 0.0
        %577 = vmatprep.subr.mxu0 0.0
        %578 = vmatpush1.msra.mxu0 0.0
        %579 = vmatprep.subr.mxu0 0.0
        %580 = vmatpush1.msra.mxu0 0.0
        %581 = vmatprep.subr.mxu0 0.0
        %582 = vmatpush1.msra.mxu0 0.0
        %583 = vmatprep.subr.mxu0 0.0
        %584 = vmatpush1.msra.mxu0 0.0
        %585 = vmatprep.subr.mxu0 0.0
        %586 = vmatpush1.msra.mxu0 0.0
        %587 = vmatprep.subr.mxu0 0.0
        %588 = vmatpush1.msra.mxu0 0.0
        %589 = vmatprep.subr.mxu0 0.0
        %590 = vmatpush1.msra.mxu0 0.0
        %591 = vmatprep.subr.mxu0 0.0
        %592 = vmatpush1.msra.mxu0 0.0
        %593 = vmatprep.subr.mxu0 0.0
        %594 = vmatpush1.msra.mxu0 0.0
        %595 = vmatprep.subr.mxu0 0.0
        %596 = vmatpush1.msra.mxu0 0.0
        %597 = vmatprep.subr.mxu0 0.0
        %598 = vmatpush1.msra.mxu0 0.0
        %599 = vmatprep.subr.mxu0 0.0
        %600 = vmatpush1.msra.mxu0 0.0
        %601 = vmatprep.subr.mxu0 0.0
        %602 = vmatpush1.msra.mxu0 0.0
        %603 = vmatprep.subr.mxu0 0.0
        %604 = vmatpush1.msra.mxu0 0.0
        %605 = vmatprep.subr.mxu0 0.0
        %606 = vmatpush1.msra.mxu0 0.0
        %607 = vmatprep.subr.mxu0 0.0
        %608 = vmatpush1.msra.mxu0 0.0
        %609 = vmatprep.mubr.f32.mxu0 0.0
        %v610 = vand.u32 %v199, 4294901760
        %v611 = vsub.f32 %v199, %v610
        %v612 = vand.u32 %v611, 4294901760
        %613 = vmatmul.mubr.f32.gmra.mrb[0].mxu0 %v612
        %v614 = vpop.f32.mrb[0].mxu0
        %v615 = vadd.f32 %v513, %v614
        %v616 = vpop.f32.mrb[0].mxu0
        %v617 = vadd.f32 %v515, %v616
        %618 = vmatprep.mubr.f32.mxu0 0.0
        %v619 = vand.u32 %v202, 4294901760
        %v620 = vsub.f32 %v202, %v619
        %v621 = vand.u32 %v620, 4294901760
        %622 = vmatmul.mubr.f32.gmra.mrb[0].mxu0 %v621
        %v623 = vpop.f32.mrb[0].mxu0
        %v624 = vadd.f32 %v521, %v623
        %v625 = vpop.f32.mrb[0].mxu0
        %v626 = vadd.f32 %v523, %v625
        %627 = vmatprep.mubr.f32.mxu0 0.0
        %v628 = vand.u32 %v205, 4294901760
        %v629 = vsub.f32 %v205, %v628
        %v630 = vand.u32 %v629, 4294901760
        %631 = vmatmul.mubr.f32.gmra.mrb[0].mxu0 %v630
        %v632 = vpop.f32.mrb[0].mxu0
        %v633 = vadd.f32 %v529, %v632
        %v634 = vpop.f32.mrb[0].mxu0
        %v635 = vadd.f32 %v531, %v634
        %636 = vmatprep.mubr.f32.mxu0 0.0
        %v637 = vand.u32 %v208, 4294901760
        %v638 = vsub.f32 %v208, %v637
        %v639 = vand.u32 %v638, 4294901760
        %640 = vmatmul.mubr.f32.gmra.mrb[0].mxu0 %v639
        %v641 = vpop.f32.mrb[0].mxu0
        %v642 = vadd.f32 %v537, %v641
        %v643 = vpop.f32.mrb[0].mxu0
        %v644 = vadd.f32 %v539, %v643
        %645 = vdwg.mxu0
        %v646 = vand.u32 %v190, 4294901760
        %v647 = vsub.f32 %v190, %v646
        %v648 = vand.u32 %v647, 4294901760
        %649 = vmatprep.subr.mxu0 %v648
        %v650 = vand.u32 %v189, 4294901760
        %v651 = vsub.f32 %v189, %v650
        %v652 = vand.u32 %v651, 4294901760
        %653 = vmatpush1.msra.mxu0 %v652
        %v654 = vand.u32 %v194, 4294901760
        %v655 = vsub.f32 %v194, %v654
        %v656 = vand.u32 %v655, 4294901760
        %657 = vmatprep.subr.mxu0 %v656
        %v658 = vand.u32 %v193, 4294901760
        %v659 = vsub.f32 %v193, %v658
        %v660 = vand.u32 %v659, 4294901760
        %661 = vmatpush1.msra.mxu0 %v660
        %662 = vmatprep.subr.mxu0 0.0
        %663 = vmatpush1.msra.mxu0 0.0
        %664 = vmatprep.subr.mxu0 0.0
        %665 = vmatpush1.msra.mxu0 0.0
        %666 = vmatprep.subr.mxu0 0.0
        %667 = vmatpush1.msra.mxu0 0.0
        %668 = vmatprep.subr.mxu0 0.0
        %669 = vmatpush1.msra.mxu0 0.0
        %670 = vmatprep.subr.mxu0 0.0
        %671 = vmatpush1.msra.mxu0 0.0
        %672 = vmatprep.subr.mxu0 0.0
        %673 = vmatpush1.msra.mxu0 0.0
        %674 = vmatprep.subr.mxu0 0.0
        %675 = vmatpush1.msra.mxu0 0.0
        %676 = vmatprep.subr.mxu0 0.0
        %677 = vmatpush1.msra.mxu0 0.0
        %678 = vmatprep.subr.mxu0 0.0
        %679 = vmatpush1.msra.mxu0 0.0
        %680 = vmatprep.subr.mxu0 0.0
        %681 = vmatpush1.msra.mxu0 0.0
        %682 = vmatprep.subr.mxu0 0.0
        %683 = vmatpush1.msra.mxu0 0.0
        %684 = vmatprep.subr.mxu0 0.0
        %685 = vmatpush1.msra.mxu0 0.0
        %686 = vmatprep.subr.mxu0 0.0
        %687 = vmatpush1.msra.mxu0 0.0
        %688 = vmatprep.subr.mxu0 0.0
        %689 = vmatpush1.msra.mxu0 0.0
        %690 = vmatprep.subr.mxu0 0.0
        %691 = vmatpush1.msra.mxu0 0.0
        %692 = vmatprep.subr.mxu0 0.0
        %693 = vmatpush1.msra.mxu0 0.0
        %694 = vmatprep.subr.mxu0 0.0
        %695 = vmatpush1.msra.mxu0 0.0
        %696 = vmatprep.subr.mxu0 0.0
        %697 = vmatpush1.msra.mxu0 0.0
        %698 = vmatprep.subr.mxu0 0.0
        %699 = vmatpush1.msra.mxu0 0.0
        %700 = vmatprep.subr.mxu0 0.0
        %701 = vmatpush1.msra.mxu0 0.0
        %702 = vmatprep.subr.mxu0 0.0
        %703 = vmatpush1.msra.mxu0 0.0
        %704 = vmatprep.subr.mxu0 0.0
        %705 = vmatpush1.msra.mxu0 0.0
        %706 = vmatprep.subr.mxu0 0.0
        %707 = vmatpush1.msra.mxu0 0.0
        %708 = vmatprep.subr.mxu0 0.0
        %709 = vmatpush1.msra.mxu0 0.0
        %710 = vmatprep.subr.mxu0 0.0
        %711 = vmatpush1.msra.mxu0 0.0
        %712 = vmatprep.subr.mxu0 0.0
        %713 = vmatpush1.msra.mxu0 0.0
        %714 = vmatprep.subr.mxu0 0.0
        %715 = vmatpush1.msra.mxu0 0.0
        %716 = vmatprep.subr.mxu0 0.0
        %717 = vmatpush1.msra.mxu0 0.0
        %718 = vmatprep.subr.mxu0 0.0
        %719 = vmatpush1.msra.mxu0 0.0
        %720 = vmatprep.subr.mxu0 0.0
        %721 = vmatpush1.msra.mxu0 0.0
        %722 = vmatprep.mubr.f32.mxu0 0.0
        %v723 = vand.u32 %v199, 4294901760
        %724 = vmatmul.mubr.f32.gmra.mrb[0].mxu0 %v723
        %v725 = vpop.f32.mrb[0].mxu0
        %v726 = vadd.f32 %v615, %v725
        %v727 = vpop.f32.mrb[0].mxu0
        %v728 = vadd.f32 %v617, %v727
        %729 = vmatprep.mubr.f32.mxu0 0.0
        %v730 = vand.u32 %v202, 4294901760
        %731 = vmatmul.mubr.f32.gmra.mrb[0].mxu0 %v730
        %v732 = vpop.f32.mrb[0].mxu0
        %v733 = vadd.f32 %v624, %v732
        %v734 = vpop.f32.mrb[0].mxu0
        %v735 = vadd.f32 %v626, %v734
        %736 = vmatprep.mubr.f32.mxu0 0.0
        %v737 = vand.u32 %v205, 4294901760
        %738 = vmatmul.mubr.f32.gmra.mrb[0].mxu0 %v737
        %v739 = vpop.f32.mrb[0].mxu0
        %v740 = vadd.f32 %v633, %v739
        %v741 = vpop.f32.mrb[0].mxu0
        %v742 = vadd.f32 %v635, %v741
        %743 = vmatprep.mubr.f32.mxu0 0.0
        %v744 = vand.u32 %v208, 4294901760
        %745 = vmatmul.mubr.f32.gmra.mrb[0].mxu0 %v744
        %v746 = vpop.f32.mrb[0].mxu0
        %v747 = vadd.f32 %v642, %v746
        %v748 = vpop.f32.mrb[0].mxu0
        %v749 = vadd.f32 %v644, %v748
        %750 = vdwg.mxu0
        %v751 = vand.u32 %v190, 4294901760
        %752 = vmatprep.subr.mxu0 %v751
        %v753 = vand.u32 %v189, 4294901760
        %754 = vmatpush1.msra.mxu0 %v753
        %v755 = vand.u32 %v194, 4294901760
        %756 = vmatprep.subr.mxu0 %v755
        %v757 = vand.u32 %v193, 4294901760
        %758 = vmatpush1.msra.mxu0 %v757
        %759 = vmatprep.subr.mxu0 0.0
        %760 = vmatpush1.msra.mxu0 0.0
        %761 = vmatprep.subr.mxu0 0.0
        %762 = vmatpush1.msra.mxu0 0.0
        %763 = vmatprep.subr.mxu0 0.0
        %764 = vmatpush1.msra.mxu0 0.0
        %765 = vmatprep.subr.mxu0 0.0
        %766 = vmatpush1.msra.mxu0 0.0
        %767 = vmatprep.subr.mxu0 0.0
        %768 = vmatpush1.msra.mxu0 0.0
        %769 = vmatprep.subr.mxu0 0.0
        %770 = vmatpush1.msra.mxu0 0.0
        %771 = vmatprep.subr.mxu0 0.0
        %772 = vmatpush1.msra.mxu0 0.0
        %773 = vmatprep.subr.mxu0 0.0
        %774 = vmatpush1.msra.mxu0 0.0
        %775 = vmatprep.subr.mxu0 0.0
        %776 = vmatpush1.msra.mxu0 0.0
        %777 = vmatprep.subr.mxu0 0.0
        %778 = vmatpush1.msra.mxu0 0.0
        %779 = vmatprep.subr.mxu0 0.0
        %780 = vmatpush1.msra.mxu0 0.0
        %781 = vmatprep.subr.mxu0 0.0
        %782 = vmatpush1.msra.mxu0 0.0
        %783 = vmatprep.subr.mxu0 0.0
        %784 = vmatpush1.msra.mxu0 0.0
        %785 = vmatprep.subr.mxu0 0.0
        %786 = vmatpush1.msra.mxu0 0.0
        %787 = vmatprep.subr.mxu0 0.0
        %788 = vmatpush1.msra.mxu0 0.0
        %789 = vmatprep.subr.mxu0 0.0
        %790 = vmatpush1.msra.mxu0 0.0
        %791 = vmatprep.subr.mxu0 0.0
        %792 = vmatpush1.msra.mxu0 0.0
        %793 = vmatprep.subr.mxu0 0.0
        %794 = vmatpush1.msra.mxu0 0.0
        %795 = vmatprep.subr.mxu0 0.0
        %796 = vmatpush1.msra.mxu0 0.0
        %797 = vmatprep.subr.mxu0 0.0
        %798 = vmatpush1.msra.mxu0 0.0
        %799 = vmatprep.subr.mxu0 0.0
        %800 = vmatpush1.msra.mxu0 0.0
        %801 = vmatprep.subr.mxu0 0.0
        %802 = vmatpush1.msra.mxu0 0.0
        %803 = vmatprep.subr.mxu0 0.0
        %804 = vmatpush1.msra.mxu0 0.0
        %805 = vmatprep.subr.mxu0 0.0
        %806 = vmatpush1.msra.mxu0 0.0
        %807 = vmatprep.subr.mxu0 0.0
        %808 = vmatpush1.msra.mxu0 0.0
        %809 = vmatprep.subr.mxu0 0.0
        %810 = vmatpush1.msra.mxu0 0.0
        %811 = vmatprep.subr.mxu0 0.0
        %812 = vmatpush1.msra.mxu0 0.0
        %813 = vmatprep.subr.mxu0 0.0
        %814 = vmatpush1.msra.mxu0 0.0
        %815 = vmatprep.subr.mxu0 0.0
        %816 = vmatpush1.msra.mxu0 0.0
        %817 = vmatprep.subr.mxu0 0.0
        %818 = vmatpush1.msra.mxu0 0.0
        %819 = vmatprep.mubr.f32.mxu0 0.0
        %v820 = vand.u32 %v199, 4294901760
        %821 = vmatmul.mubr.f32.gmra.mrb[0].mxu0 %v820
        %v822 = vpop.f32.mrb[0].mxu0
        %v823 = vadd.f32 %v726, %v822
        %v824 = vpop.f32.mrb[0].mxu0
        %v825 = vadd.f32 %v728, %v824
        %826 = vmatprep.mubr.f32.mxu0 0.0
        %v827 = vand.u32 %v202, 4294901760
        %828 = vmatmul.mubr.f32.gmra.mrb[0].mxu0 %v827
        %v829 = vpop.f32.mrb[0].mxu0
        %v830 = vadd.f32 %v733, %v829
        %v831 = vpop.f32.mrb[0].mxu0
        %v832 = vadd.f32 %v735, %v831
        %833 = vmatprep.mubr.f32.mxu0 0.0
        %v834 = vand.u32 %v205, 4294901760
        %835 = vmatmul.mubr.f32.gmra.mrb[0].mxu0 %v834
        %v836 = vpop.f32.mrb[0].mxu0
        %v837 = vadd.f32 %v740, %v836
        %v838 = vpop.f32.mrb[0].mxu0
        %v839 = vadd.f32 %v742, %v838
        %840 = vmatprep.mubr.f32.mxu0 0.0
        %v841 = vand.u32 %v208, 4294901760
        %842 = vmatmul.mubr.f32.gmra.mrb[0].mxu0 %v841
        %v843 = vpop.f32.mrb[0].mxu0
        %v844 = vadd.f32 %v747, %v843
        %v845 = vpop.f32.mrb[0].mxu0
        %v846 = vadd.f32 %v749, %v845
        %847 = vdwg.mxu0
        %v848 = vand.u32 %v192, 4294901760
        %849 = vmatprep.subr.mxu0 %v848
        %v850 = vand.u32 %v191, 4294901760
        %851 = vmatpush1.msra.mxu0 %v850
        %v852 = vand.u32 %v196, 4294901760
        %853 = vmatprep.subr.mxu0 %v852
        %v854 = vand.u32 %v195, 4294901760
        %855 = vmatpush1.msra.mxu0 %v854
        %856 = vmatprep.subr.mxu0 0.0
        %857 = vmatpush1.msra.mxu0 0.0
        %858 = vmatprep.subr.mxu0 0.0
        %859 = vmatpush1.msra.mxu0 0.0
        %860 = vmatprep.subr.mxu0 0.0
        %861 = vmatpush1.msra.mxu0 0.0
        %862 = vmatprep.subr.mxu0 0.0
        %863 = vmatpush1.msra.mxu0 0.0
        %864 = vmatprep.subr.mxu0 0.0
        %865 = vmatpush1.msra.mxu0 0.0
        %866 = vmatprep.subr.mxu0 0.0
        %867 = vmatpush1.msra.mxu0 0.0
        %868 = vmatprep.subr.mxu0 0.0
        %869 = vmatpush1.msra.mxu0 0.0
        %870 = vmatprep.subr.mxu0 0.0
        %871 = vmatpush1.msra.mxu0 0.0
        %872 = vmatprep.subr.mxu0 0.0
        %873 = vmatpush1.msra.mxu0 0.0
        %874 = vmatprep.subr.mxu0 0.0
        %875 = vmatpush1.msra.mxu0 0.0
        %876 = vmatprep.subr.mxu0 0.0
        %877 = vmatpush1.msra.mxu0 0.0
        %878 = vmatprep.subr.mxu0 0.0
        %879 = vmatpush1.msra.mxu0 0.0
        %880 = vmatprep.subr.mxu0 0.0
        %881 = vmatpush1.msra.mxu0 0.0
        %882 = vmatprep.subr.mxu0 0.0
        %883 = vmatpush1.msra.mxu0 0.0
        %884 = vmatprep.subr.mxu0 0.0
        %885 = vmatpush1.msra.mxu0 0.0
        %886 = vmatprep.subr.mxu0 0.0
        %887 = vmatpush1.msra.mxu0 0.0
        %888 = vmatprep.subr.mxu0 0.0
        %889 = vmatpush1.msra.mxu0 0.0
        %890 = vmatprep.subr.mxu0 0.0
        %891 = vmatpush1.msra.mxu0 0.0
        %892 = vmatprep.subr.mxu0 0.0
        %893 = vmatpush1.msra.mxu0 0.0
        %894 = vmatprep.subr.mxu0 0.0
        %895 = vmatpush1.msra.mxu0 0.0
        %896 = vmatprep.subr.mxu0 0.0
        %897 = vmatpush1.msra.mxu0 0.0
        %898 = vmatprep.subr.mxu0 0.0
        %899 = vmatpush1.msra.mxu0 0.0
        %900 = vmatprep.subr.mxu0 0.0
        %901 = vmatpush1.msra.mxu0 0.0
        %902 = vmatprep.subr.mxu0 0.0
        %903 = vmatpush1.msra.mxu0 0.0
        %904 = vmatprep.subr.mxu0 0.0
        %905 = vmatpush1.msra.mxu0 0.0
        %906 = vmatprep.subr.mxu0 0.0
        %907 = vmatpush1.msra.mxu0 0.0
        %908 = vmatprep.subr.mxu0 0.0
        %909 = vmatpush1.msra.mxu0 0.0
        %910 = vmatprep.subr.mxu0 0.0
        %911 = vmatpush1.msra.mxu0 0.0
        %912 = vmatprep.subr.mxu0 0.0
        %913 = vmatpush1.msra.mxu0 0.0
        %914 = vmatprep.subr.mxu0 0.0
        %915 = vmatpush1.msra.mxu0 0.0
        %916 = vmatprep.mubr.f32.mxu0 0.0
        %v917 = vand.u32 %v199, 4294901760
        %v918 = vsub.f32 %v199, %v917
        %v919 = vand.u32 %v918, 4294901760
        %v920 = vsub.f32 %v918, %v919
        %v921 = vand.u32 %v920, 4294901760
        %922 = vmatmul.mubr.f32.gmra.mrb[0].mxu0 %v921
        %v923 = vpop.f32.mrb[0].mxu0
        %v924 = vadd.f32 0.0, %v923
        %v925 = vpop.f32.mrb[0].mxu0
        %v926 = vadd.f32 0.0, %v925
        %927 = vmatprep.mubr.f32.mxu0 0.0
        %v928 = vand.u32 %v202, 4294901760
        %v929 = vsub.f32 %v202, %v928
        %v930 = vand.u32 %v929, 4294901760
        %v931 = vsub.f32 %v929, %v930
        %v932 = vand.u32 %v931, 4294901760
        %933 = vmatmul.mubr.f32.gmra.mrb[0].mxu0 %v932
        %v934 = vpop.f32.mrb[0].mxu0
        %v935 = vadd.f32 0.0, %v934
        %v936 = vpop.f32.mrb[0].mxu0
        %v937 = vadd.f32 0.0, %v936
        %938 = vmatprep.mubr.f32.mxu0 0.0
        %v939 = vand.u32 %v205, 4294901760
        %v940 = vsub.f32 %v205, %v939
        %v941 = vand.u32 %v940, 4294901760
        %v942 = vsub.f32 %v940, %v941
        %v943 = vand.u32 %v942, 4294901760
        %944 = vmatmul.mubr.f32.gmra.mrb[0].mxu0 %v943
        %v945 = vpop.f32.mrb[0].mxu0
        %v946 = vadd.f32 0.0, %v945
        %v947 = vpop.f32.mrb[0].mxu0
        %v948 = vadd.f32 0.0, %v947
        %949 = vmatprep.mubr.f32.mxu0 0.0
        %v950 = vand.u32 %v208, 4294901760
        %v951 = vsub.f32 %v208, %v950
        %v952 = vand.u32 %v951, 4294901760
        %v953 = vsub.f32 %v951, %v952
        %v954 = vand.u32 %v953, 4294901760
        %955 = vmatmul.mubr.f32.gmra.mrb[0].mxu0 %v954
        %v956 = vpop.f32.mrb[0].mxu0
        %v957 = vadd.f32 0.0, %v956
        %v958 = vpop.f32.mrb[0].mxu0
        %v959 = vadd.f32 0.0, %v958
        %960 = vdwg.mxu0
        %v961 = vand.u32 %v192, 4294901760
        %v962 = vsub.f32 %v192, %v961
        %v963 = vand.u32 %v962, 4294901760
        %v964 = vsub.f32 %v962, %v963
        %v965 = vand.u32 %v964, 4294901760
        %966 = vmatprep.subr.mxu0 %v965
        %v967 = vand.u32 %v191, 4294901760
        %v968 = vsub.f32 %v191, %v967
        %v969 = vand.u32 %v968, 4294901760
        %v970 = vsub.f32 %v968, %v969
        %v971 = vand.u32 %v970, 4294901760
        %972 = vmatpush1.msra.mxu0 %v971
        %v973 = vand.u32 %v196, 4294901760
        %v974 = vsub.f32 %v196, %v973
        %v975 = vand.u32 %v974, 4294901760
        %v976 = vsub.f32 %v974, %v975
        %v977 = vand.u32 %v976, 4294901760
        %978 = vmatprep.subr.mxu0 %v977
        %v979 = vand.u32 %v195, 4294901760
        %v980 = vsub.f32 %v195, %v979
        %v981 = vand.u32 %v980, 4294901760
        %v982 = vsub.f32 %v980, %v981
        %v983 = vand.u32 %v982, 4294901760
        %984 = vmatpush1.msra.mxu0 %v983
        %985 = vmatprep.subr.mxu0 0.0
        %986 = vmatpush1.msra.mxu0 0.0
        %987 = vmatprep.subr.mxu0 0.0
        %988 = vmatpush1.msra.mxu0 0.0
        %989 = vmatprep.subr.mxu0 0.0
        %990 = vmatpush1.msra.mxu0 0.0
        %991 = vmatprep.subr.mxu0 0.0
        %992 = vmatpush1.msra.mxu0 0.0
        %993 = vmatprep.subr.mxu0 0.0
        %994 = vmatpush1.msra.mxu0 0.0
        %995 = vmatprep.subr.mxu0 0.0
        %996 = vmatpush1.msra.mxu0 0.0
        %997 = vmatprep.subr.mxu0 0.0
        %998 = vmatpush1.msra.mxu0 0.0
        %999 = vmatprep.subr.mxu0 0.0
        %1000 = vmatpush1.msra.mxu0 0.0
        %1001 = vmatprep.subr.mxu0 0.0
        %1002 = vmatpush1.msra.mxu0 0.0
        %1003 = vmatprep.subr.mxu0 0.0
        %1004 = vmatpush1.msra.mxu0 0.0
        %1005 = vmatprep.subr.mxu0 0.0
        %1006 = vmatpush1.msra.mxu0 0.0
        %1007 = vmatprep.subr.mxu0 0.0
        %1008 = vmatpush1.msra.mxu0 0.0
        %1009 = vmatprep.subr.mxu0 0.0
        %1010 = vmatpush1.msra.mxu0 0.0
        %1011 = vmatprep.subr.mxu0 0.0
        %1012 = vmatpush1.msra.mxu0 0.0
        %1013 = vmatprep.subr.mxu0 0.0
        %1014 = vmatpush1.msra.mxu0 0.0
        %1015 = vmatprep.subr.mxu0 0.0
        %1016 = vmatpush1.msra.mxu0 0.0
        %1017 = vmatprep.subr.mxu0 0.0
        %1018 = vmatpush1.msra.mxu0 0.0
        %1019 = vmatprep.subr.mxu0 0.0
        %1020 = vmatpush1.msra.mxu0 0.0
        %1021 = vmatprep.subr.mxu0 0.0
        %1022 = vmatpush1.msra.mxu0 0.0
        %1023 = vmatprep.subr.mxu0 0.0
        %1024 = vmatpush1.msra.mxu0 0.0
        %1025 = vmatprep.subr.mxu0 0.0
        %1026 = vmatpush1.msra.mxu0 0.0
        %1027 = vmatprep.subr.mxu0 0.0
        %1028 = vmatpush1.msra.mxu0 0.0
        %1029 = vmatprep.subr.mxu0 0.0
        %1030 = vmatpush1.msra.mxu0 0.0
        %1031 = vmatprep.subr.mxu0 0.0
        %1032 = vmatpush1.msra.mxu0 0.0
        %1033 = vmatprep.subr.mxu0 0.0
        %1034 = vmatpush1.msra.mxu0 0.0
        %1035 = vmatprep.subr.mxu0 0.0
        %1036 = vmatpush1.msra.mxu0 0.0
        %1037 = vmatprep.subr.mxu0 0.0
        %1038 = vmatpush1.msra.mxu0 0.0
        %1039 = vmatprep.subr.mxu0 0.0
        %1040 = vmatpush1.msra.mxu0 0.0
        %1041 = vmatprep.subr.mxu0 0.0
        %1042 = vmatpush1.msra.mxu0 0.0
        %1043 = vmatprep.subr.mxu0 0.0
        %1044 = vmatpush1.msra.mxu0 0.0
        %1045 = vmatprep.mubr.f32.mxu0 0.0
        %v1046 = vand.u32 %v199, 4294901760
        %1047 = vmatmul.mubr.f32.gmra.mrb[0].mxu0 %v1046
        %v1048 = vpop.f32.mrb[0].mxu0
        %v1049 = vadd.f32 %v924, %v1048
        %v1050 = vpop.f32.mrb[0].mxu0
        %v1051 = vadd.f32 %v926, %v1050
        %1052 = vmatprep.mubr.f32.mxu0 0.0
        %v1053 = vand.u32 %v202, 4294901760
        %1054 = vmatmul.mubr.f32.gmra.mrb[0].mxu0 %v1053
        %v1055 = vpop.f32.mrb[0].mxu0
        %v1056 = vadd.f32 %v935, %v1055
        %v1057 = vpop.f32.mrb[0].mxu0
        %v1058 = vadd.f32 %v937, %v1057
        %1059 = vmatprep.mubr.f32.mxu0 0.0
        %v1060 = vand.u32 %v205, 4294901760
        %1061 = vmatmul.mubr.f32.gmra.mrb[0].mxu0 %v1060
        %v1062 = vpop.f32.mrb[0].mxu0
        %v1063 = vadd.f32 %v946, %v1062
        %v1064 = vpop.f32.mrb[0].mxu0
        %v1065 = vadd.f32 %v948, %v1064
        %1066 = vmatprep.mubr.f32.mxu0 0.0
        %v1067 = vand.u32 %v208, 4294901760
        %1068 = vmatmul.mubr.f32.gmra.mrb[0].mxu0 %v1067
        %v1069 = vpop.f32.mrb[0].mxu0
        %v1070 = vadd.f32 %v957, %v1069
        %v1071 = vpop.f32.mrb[0].mxu0
        %v1072 = vadd.f32 %v959, %v1071
        %1073 = vdwg.mxu0
        %v1074 = vand.u32 %v192, 4294901760
        %v1075 = vsub.f32 %v192, %v1074
        %1076 = vmatprep.subr.mxu0 %v1075
        %v1077 = vand.u32 %v191, 4294901760
        %v1078 = vsub.f32 %v191, %v1077
        %1079 = vmatpush1.msra.mxu0 %v1078
        %v1080 = vand.u32 %v196, 4294901760
        %v1081 = vsub.f32 %v196, %v1080
        %1082 = vmatprep.subr.mxu0 %v1081
        %v1083 = vand.u32 %v195, 4294901760
        %v1084 = vsub.f32 %v195, %v1083
        %1085 = vmatpush1.msra.mxu0 %v1084
        %1086 = vmatprep.subr.mxu0 0.0
        %1087 = vmatpush1.msra.mxu0 0.0
        %1088 = vmatprep.subr.mxu0 0.0
        %1089 = vmatpush1.msra.mxu0 0.0
        %1090 = vmatprep.subr.mxu0 0.0
        %1091 = vmatpush1.msra.mxu0 0.0
        %1092 = vmatprep.subr.mxu0 0.0
        %1093 = vmatpush1.msra.mxu0 0.0
        %1094 = vmatprep.subr.mxu0 0.0
        %1095 = vmatpush1.msra.mxu0 0.0
        %1096 = vmatprep.subr.mxu0 0.0
        %1097 = vmatpush1.msra.mxu0 0.0
        %1098 = vmatprep.subr.mxu0 0.0
        %1099 = vmatpush1.msra.mxu0 0.0
        %1100 = vmatprep.subr.mxu0 0.0
        %1101 = vmatpush1.msra.mxu0 0.0
        %1102 = vmatprep.subr.mxu0 0.0
        %1103 = vmatpush1.msra.mxu0 0.0
        %1104 = vmatprep.subr.mxu0 0.0
        %1105 = vmatpush1.msra.mxu0 0.0
        %1106 = vmatprep.subr.mxu0 0.0
        %1107 = vmatpush1.msra.mxu0 0.0
        %1108 = vmatprep.subr.mxu0 0.0
        %1109 = vmatpush1.msra.mxu0 0.0
        %1110 = vmatprep.subr.mxu0 0.0
        %1111 = vmatpush1.msra.mxu0 0.0
        %1112 = vmatprep.subr.mxu0 0.0
        %1113 = vmatpush1.msra.mxu0 0.0
        %1114 = vmatprep.subr.mxu0 0.0
        %1115 = vmatpush1.msra.mxu0 0.0
        %1116 = vmatprep.subr.mxu0 0.0
        %1117 = vmatpush1.msra.mxu0 0.0
        %1118 = vmatprep.subr.mxu0 0.0
        %1119 = vmatpush1.msra.mxu0 0.0
        %1120 = vmatprep.subr.mxu0 0.0
        %1121 = vmatpush1.msra.mxu0 0.0
        %1122 = vmatprep.subr.mxu0 0.0
        %1123 = vmatpush1.msra.mxu0 0.0
        %1124 = vmatprep.subr.mxu0 0.0
        %1125 = vmatpush1.msra.mxu0 0.0
        %1126 = vmatprep.subr.mxu0 0.0
        %1127 = vmatpush1.msra.mxu0 0.0
        %1128 = vmatprep.subr.mxu0 0.0
        %1129 = vmatpush1.msra.mxu0 0.0
        %1130 = vmatprep.subr.mxu0 0.0
        %1131 = vmatpush1.msra.mxu0 0.0
        %1132 = vmatprep.subr.mxu0 0.0
        %1133 = vmatpush1.msra.mxu0 0.0
        %1134 = vmatprep.subr.mxu0 0.0
        %1135 = vmatpush1.msra.mxu0 0.0
        %1136 = vmatprep.subr.mxu0 0.0
        %1137 = vmatpush1.msra.mxu0 0.0
        %1138 = vmatprep.subr.mxu0 0.0
        %1139 = vmatpush1.msra.mxu0 0.0
        %1140 = vmatprep.subr.mxu0 0.0
        %1141 = vmatpush1.msra.mxu0 0.0
        %1142 = vmatprep.subr.mxu0 0.0
        %1143 = vmatpush1.msra.mxu0 0.0
        %1144 = vmatprep.subr.mxu0 0.0
        %1145 = vmatpush1.msra.mxu0 0.0
        %1146 = vmatprep.mubr.f32.mxu0 0.0
        %v1147 = vand.u32 %v199, 4294901760
        %v1148 = vsub.f32 %v199, %v1147
        %1149 = vmatmul.mubr.f32.gmra.mrb[0].mxu0 %v1148
        %v1150 = vpop.f32.mrb[0].mxu0
        %v1151 = vadd.f32 %v1049, %v1150
        %v1152 = vpop.f32.mrb[0].mxu0
        %v1153 = vadd.f32 %v1051, %v1152
        %1154 = vmatprep.mubr.f32.mxu0 0.0
        %v1155 = vand.u32 %v202, 4294901760
        %v1156 = vsub.f32 %v202, %v1155
        %1157 = vmatmul.mubr.f32.gmra.mrb[0].mxu0 %v1156
        %v1158 = vpop.f32.mrb[0].mxu0
        %v1159 = vadd.f32 %v1056, %v1158
        %v1160 = vpop.f32.mrb[0].mxu0
        %v1161 = vadd.f32 %v1058, %v1160
        %1162 = vmatprep.mubr.f32.mxu0 0.0
        %v1163 = vand.u32 %v205, 4294901760
        %v1164 = vsub.f32 %v205, %v1163
        %1165 = vmatmul.mubr.f32.gmra.mrb[0].mxu0 %v1164
        %v1166 = vpop.f32.mrb[0].mxu0
        %v1167 = vadd.f32 %v1063, %v1166
        %v1168 = vpop.f32.mrb[0].mxu0
        %v1169 = vadd.f32 %v1065, %v1168
        %1170 = vmatprep.mubr.f32.mxu0 0.0
        %v1171 = vand.u32 %v208, 4294901760
        %v1172 = vsub.f32 %v208, %v1171
        %1173 = vmatmul.mubr.f32.gmra.mrb[0].mxu0 %v1172
        %v1174 = vpop.f32.mrb[0].mxu0
        %v1175 = vadd.f32 %v1070, %v1174
        %v1176 = vpop.f32.mrb[0].mxu0
        %v1177 = vadd.f32 %v1072, %v1176
        %1178 = vdwg.mxu0
        %v1179 = vand.u32 %v192, 4294901760
        %1180 = vmatprep.subr.mxu0 %v1179
        %v1181 = vand.u32 %v191, 4294901760
        %1182 = vmatpush1.msra.mxu0 %v1181
        %v1183 = vand.u32 %v196, 4294901760
        %1184 = vmatprep.subr.mxu0 %v1183
        %v1185 = vand.u32 %v195, 4294901760
        %1186 = vmatpush1.msra.mxu0 %v1185
        %1187 = vmatprep.subr.mxu0 0.0
        %1188 = vmatpush1.msra.mxu0 0.0
        %1189 = vmatprep.subr.mxu0 0.0
        %1190 = vmatpush1.msra.mxu0 0.0
        %1191 = vmatprep.subr.mxu0 0.0
        %1192 = vmatpush1.msra.mxu0 0.0
        %1193 = vmatprep.subr.mxu0 0.0
        %1194 = vmatpush1.msra.mxu0 0.0
        %1195 = vmatprep.subr.mxu0 0.0
        %1196 = vmatpush1.msra.mxu0 0.0
        %1197 = vmatprep.subr.mxu0 0.0
        %1198 = vmatpush1.msra.mxu0 0.0
        %1199 = vmatprep.subr.mxu0 0.0
        %1200 = vmatpush1.msra.mxu0 0.0
        %1201 = vmatprep.subr.mxu0 0.0
        %1202 = vmatpush1.msra.mxu0 0.0
        %1203 = vmatprep.subr.mxu0 0.0
        %1204 = vmatpush1.msra.mxu0 0.0
        %1205 = vmatprep.subr.mxu0 0.0
        %1206 = vmatpush1.msra.mxu0 0.0
        %1207 = vmatprep.subr.mxu0 0.0
        %1208 = vmatpush1.msra.mxu0 0.0
        %1209 = vmatprep.subr.mxu0 0.0
        %1210 = vmatpush1.msra.mxu0 0.0
        %1211 = vmatprep.subr.mxu0 0.0
        %1212 = vmatpush1.msra.mxu0 0.0
        %1213 = vmatprep.subr.mxu0 0.0
        %1214 = vmatpush1.msra.mxu0 0.0
        %1215 = vmatprep.subr.mxu0 0.0
        %1216 = vmatpush1.msra.mxu0 0.0
        %1217 = vmatprep.subr.mxu0 0.0
        %1218 = vmatpush1.msra.mxu0 0.0
        %1219 = vmatprep.subr.mxu0 0.0
        %1220 = vmatpush1.msra.mxu0 0.0
        %1221 = vmatprep.subr.mxu0 0.0
        %1222 = vmatpush1.msra.mxu0 0.0
        %1223 = vmatprep.subr.mxu0 0.0
        %1224 = vmatpush1.msra.mxu0 0.0
        %1225 = vmatprep.subr.mxu0 0.0
        %1226 = vmatpush1.msra.mxu0 0.0
        %1227 = vmatprep.subr.mxu0 0.0
        %1228 = vmatpush1.msra.mxu0 0.0
        %1229 = vmatprep.subr.mxu0 0.0
        %1230 = vmatpush1.msra.mxu0 0.0
        %1231 = vmatprep.subr.mxu0 0.0
        %1232 = vmatpush1.msra.mxu0 0.0
        %1233 = vmatprep.subr.mxu0 0.0
        %1234 = vmatpush1.msra.mxu0 0.0
        %1235 = vmatprep.subr.mxu0 0.0
        %1236 = vmatpush1.msra.mxu0 0.0
        %1237 = vmatprep.subr.mxu0 0.0
        %1238 = vmatpush1.msra.mxu0 0.0
        %1239 = vmatprep.subr.mxu0 0.0
        %1240 = vmatpush1.msra.mxu0 0.0
        %1241 = vmatprep.subr.mxu0 0.0
        %1242 = vmatpush1.msra.mxu0 0.0
        %1243 = vmatprep.subr.mxu0 0.0
        %1244 = vmatpush1.msra.mxu0 0.0
        %1245 = vmatprep.subr.mxu0 0.0
        %1246 = vmatpush1.msra.mxu0 0.0
        %1247 = vmatprep.mubr.f32.mxu0 0.0
        %v1248 = vand.u32 %v199, 4294901760
        %v1249 = vsub.f32 %v199, %v1248
        %v1250 = vand.u32 %v1249, 4294901760
        %1251 = vmatmul.mubr.f32.gmra.mrb[0].mxu0 %v1250
        %v1252 = vpop.f32.mrb[0].mxu0
        %v1253 = vadd.f32 %v1151, %v1252
        %v1254 = vpop.f32.mrb[0].mxu0
        %v1255 = vadd.f32 %v1153, %v1254
        %1256 = vmatprep.mubr.f32.mxu0 0.0
        %v1257 = vand.u32 %v202, 4294901760
        %v1258 = vsub.f32 %v202, %v1257
        %v1259 = vand.u32 %v1258, 4294901760
        %1260 = vmatmul.mubr.f32.gmra.mrb[0].mxu0 %v1259
        %v1261 = vpop.f32.mrb[0].mxu0
        %v1262 = vadd.f32 %v1159, %v1261
        %v1263 = vpop.f32.mrb[0].mxu0
        %v1264 = vadd.f32 %v1161, %v1263
        %1265 = vmatprep.mubr.f32.mxu0 0.0
        %v1266 = vand.u32 %v205, 4294901760
        %v1267 = vsub.f32 %v205, %v1266
        %v1268 = vand.u32 %v1267, 4294901760
        %1269 = vmatmul.mubr.f32.gmra.mrb[0].mxu0 %v1268
        %v1270 = vpop.f32.mrb[0].mxu0
        %v1271 = vadd.f32 %v1167, %v1270
        %v1272 = vpop.f32.mrb[0].mxu0
        %v1273 = vadd.f32 %v1169, %v1272
        %1274 = vmatprep.mubr.f32.mxu0 0.0
        %v1275 = vand.u32 %v208, 4294901760
        %v1276 = vsub.f32 %v208, %v1275
        %v1277 = vand.u32 %v1276, 4294901760
        %1278 = vmatmul.mubr.f32.gmra.mrb[0].mxu0 %v1277
        %v1279 = vpop.f32.mrb[0].mxu0
        %v1280 = vadd.f32 %v1175, %v1279
        %v1281 = vpop.f32.mrb[0].mxu0
        %v1282 = vadd.f32 %v1177, %v1281
        %1283 = vdwg.mxu0
        %v1284 = vand.u32 %v192, 4294901760
        %v1285 = vsub.f32 %v192, %v1284
        %v1286 = vand.u32 %v1285, 4294901760
        %1287 = vmatprep.subr.mxu0 %v1286
        %v1288 = vand.u32 %v191, 4294901760
        %v1289 = vsub.f32 %v191, %v1288
        %v1290 = vand.u32 %v1289, 4294901760
        %1291 = vmatpush1.msra.mxu0 %v1290
        %v1292 = vand.u32 %v196, 4294901760
        %v1293 = vsub.f32 %v196, %v1292
        %v1294 = vand.u32 %v1293, 4294901760
        %1295 = vmatprep.subr.mxu0 %v1294
        %v1296 = vand.u32 %v195, 4294901760
        %v1297 = vsub.f32 %v195, %v1296
        %v1298 = vand.u32 %v1297, 4294901760
        %1299 = vmatpush1.msra.mxu0 %v1298
        %1300 = vmatprep.subr.mxu0 0.0
        %1301 = vmatpush1.msra.mxu0 0.0
        %1302 = vmatprep.subr.mxu0 0.0
        %1303 = vmatpush1.msra.mxu0 0.0
        %1304 = vmatprep.subr.mxu0 0.0
        %1305 = vmatpush1.msra.mxu0 0.0
        %1306 = vmatprep.subr.mxu0 0.0
        %1307 = vmatpush1.msra.mxu0 0.0
        %1308 = vmatprep.subr.mxu0 0.0
        %1309 = vmatpush1.msra.mxu0 0.0
        %1310 = vmatprep.subr.mxu0 0.0
        %1311 = vmatpush1.msra.mxu0 0.0
        %1312 = vmatprep.subr.mxu0 0.0
        %1313 = vmatpush1.msra.mxu0 0.0
        %1314 = vmatprep.subr.mxu0 0.0
        %1315 = vmatpush1.msra.mxu0 0.0
        %1316 = vmatprep.subr.mxu0 0.0
        %1317 = vmatpush1.msra.mxu0 0.0
        %1318 = vmatprep.subr.mxu0 0.0
        %1319 = vmatpush1.msra.mxu0 0.0
        %1320 = vmatprep.subr.mxu0 0.0
        %1321 = vmatpush1.msra.mxu0 0.0
        %1322 = vmatprep.subr.mxu0 0.0
        %1323 = vmatpush1.msra.mxu0 0.0
        %1324 = vmatprep.subr.mxu0 0.0
        %1325 = vmatpush1.msra.mxu0 0.0
        %1326 = vmatprep.subr.mxu0 0.0
        %1327 = vmatpush1.msra.mxu0 0.0
        %1328 = vmatprep.subr.mxu0 0.0
        %1329 = vmatpush1.msra.mxu0 0.0
        %1330 = vmatprep.subr.mxu0 0.0
        %1331 = vmatpush1.msra.mxu0 0.0
        %1332 = vmatprep.subr.mxu0 0.0
        %1333 = vmatpush1.msra.mxu0 0.0
        %1334 = vmatprep.subr.mxu0 0.0
        %1335 = vmatpush1.msra.mxu0 0.0
        %1336 = vmatprep.subr.mxu0 0.0
        %1337 = vmatpush1.msra.mxu0 0.0
        %1338 = vmatprep.subr.mxu0 0.0
        %1339 = vmatpush1.msra.mxu0 0.0
        %1340 = vmatprep.subr.mxu0 0.0
        %1341 = vmatpush1.msra.mxu0 0.0
        %1342 = vmatprep.subr.mxu0 0.0
        %1343 = vmatpush1.msra.mxu0 0.0
        %1344 = vmatprep.subr.mxu0 0.0
        %1345 = vmatpush1.msra.mxu0 0.0
        %1346 = vmatprep.subr.mxu0 0.0
        %1347 = vmatpush1.msra.mxu0 0.0
        %1348 = vmatprep.subr.mxu0 0.0
        %1349 = vmatpush1.msra.mxu0 0.0
        %1350 = vmatprep.subr.mxu0 0.0
        %1351 = vmatpush1.msra.mxu0 0.0
        %1352 = vmatprep.subr.mxu0 0.0
        %1353 = vmatpush1.msra.mxu0 0.0
        %1354 = vmatprep.subr.mxu0 0.0
        %1355 = vmatpush1.msra.mxu0 0.0
        %1356 = vmatprep.subr.mxu0 0.0
        %1357 = vmatpush1.msra.mxu0 0.0
        %1358 = vmatprep.subr.mxu0 0.0
        %1359 = vmatpush1.msra.mxu0 0.0
        %1360 = vmatprep.mubr.f32.mxu0 0.0
        %v1361 = vand.u32 %v199, 4294901760
        %1362 = vmatmul.mubr.f32.gmra.mrb[0].mxu0 %v1361
        %v1363 = vpop.f32.mrb[0].mxu0
        %v1364 = vadd.f32 %v1253, %v1363
        %v1365 = vpop.f32.mrb[0].mxu0
        %v1366 = vadd.f32 %v1255, %v1365
        %1367 = vmatprep.mubr.f32.mxu0 0.0
        %v1368 = vand.u32 %v202, 4294901760
        %1369 = vmatmul.mubr.f32.gmra.mrb[0].mxu0 %v1368
        %v1370 = vpop.f32.mrb[0].mxu0
        %v1371 = vadd.f32 %v1262, %v1370
        %v1372 = vpop.f32.mrb[0].mxu0
        %v1373 = vadd.f32 %v1264, %v1372
        %1374 = vmatprep.mubr.f32.mxu0 0.0
        %v1375 = vand.u32 %v205, 4294901760
        %1376 = vmatmul.mubr.f32.gmra.mrb[0].mxu0 %v1375
        %v1377 = vpop.f32.mrb[0].mxu0
        %v1378 = vadd.f32 %v1271, %v1377
        %v1379 = vpop.f32.mrb[0].mxu0
        %v1380 = vadd.f32 %v1273, %v1379
        %1381 = vmatprep.mubr.f32.mxu0 0.0
        %v1382 = vand.u32 %v208, 4294901760
        %1383 = vmatmul.mubr.f32.gmra.mrb[0].mxu0 %v1382
        %v1384 = vpop.f32.mrb[0].mxu0
        %v1385 = vadd.f32 %v1280, %v1384
        %v1386 = vpop.f32.mrb[0].mxu0
        %v1387 = vadd.f32 %v1282, %v1386
        %1388 = vdwg.mxu0
        %v1389 = vand.u32 %v192, 4294901760
        %1390 = vmatprep.subr.mxu0 %v1389
        %v1391 = vand.u32 %v191, 4294901760
        %1392 = vmatpush1.msra.mxu0 %v1391
        %v1393 = vand.u32 %v196, 4294901760
        %1394 = vmatprep.subr.mxu0 %v1393
        %v1395 = vand.u32 %v195, 4294901760
        %1396 = vmatpush1.msra.mxu0 %v1395
        %1397 = vmatprep.subr.mxu0 0.0
        %1398 = vmatpush1.msra.mxu0 0.0
        %1399 = vmatprep.subr.mxu0 0.0
        %1400 = vmatpush1.msra.mxu0 0.0
        %1401 = vmatprep.subr.mxu0 0.0
        %1402 = vmatpush1.msra.mxu0 0.0
        %1403 = vmatprep.subr.mxu0 0.0
        %1404 = vmatpush1.msra.mxu0 0.0
        %1405 = vmatprep.subr.mxu0 0.0
        %1406 = vmatpush1.msra.mxu0 0.0
        %1407 = vmatprep.subr.mxu0 0.0
        %1408 = vmatpush1.msra.mxu0 0.0
        %1409 = vmatprep.subr.mxu0 0.0
        %1410 = vmatpush1.msra.mxu0 0.0
        %1411 = vmatprep.subr.mxu0 0.0
        %1412 = vmatpush1.msra.mxu0 0.0
        %1413 = vmatprep.subr.mxu0 0.0
        %1414 = vmatpush1.msra.mxu0 0.0
        %1415 = vmatprep.subr.mxu0 0.0
        %1416 = vmatpush1.msra.mxu0 0.0
        %1417 = vmatprep.subr.mxu0 0.0
        %1418 = vmatpush1.msra.mxu0 0.0
        %1419 = vmatprep.subr.mxu0 0.0
        %1420 = vmatpush1.msra.mxu0 0.0
        %1421 = vmatprep.subr.mxu0 0.0
        %1422 = vmatpush1.msra.mxu0 0.0
        %1423 = vmatprep.subr.mxu0 0.0
        %1424 = vmatpush1.msra.mxu0 0.0
        %1425 = vmatprep.subr.mxu0 0.0
        %1426 = vmatpush1.msra.mxu0 0.0
        %1427 = vmatprep.subr.mxu0 0.0
        %1428 = vmatpush1.msra.mxu0 0.0
        %1429 = vmatprep.subr.mxu0 0.0
        %1430 = vmatpush1.msra.mxu0 0.0
        %1431 = vmatprep.subr.mxu0 0.0
        %1432 = vmatpush1.msra.mxu0 0.0
        %1433 = vmatprep.subr.mxu0 0.0
        %1434 = vmatpush1.msra.mxu0 0.0
        %1435 = vmatprep.subr.mxu0 0.0
        %1436 = vmatpush1.msra.mxu0 0.0
        %1437 = vmatprep.subr.mxu0 0.0
        %1438 = vmatpush1.msra.mxu0 0.0
        %1439 = vmatprep.subr.mxu0 0.0
        %1440 = vmatpush1.msra.mxu0 0.0
        %1441 = vmatprep.subr.mxu0 0.0
        %1442 = vmatpush1.msra.mxu0 0.0
        %1443 = vmatprep.subr.mxu0 0.0
        %1444 = vmatpush1.msra.mxu0 0.0
        %1445 = vmatprep.subr.mxu0 0.0
        %1446 = vmatpush1.msra.mxu0 0.0
        %1447 = vmatprep.subr.mxu0 0.0
        %1448 = vmatpush1.msra.mxu0 0.0
        %1449 = vmatprep.subr.mxu0 0.0
        %1450 = vmatpush1.msra.mxu0 0.0
        %1451 = vmatprep.subr.mxu0 0.0
        %1452 = vmatpush1.msra.mxu0 0.0
        %1453 = vmatprep.subr.mxu0 0.0
        %1454 = vmatpush1.msra.mxu0 0.0
        %1455 = vmatprep.subr.mxu0 0.0
        %1456 = vmatpush1.msra.mxu0 0.0
        %1457 = vmatprep.mubr.f32.mxu0 0.0
        %v1458 = vand.u32 %v199, 4294901760
        %1459 = vmatmul.mubr.f32.gmra.mrb[0].mxu0 %v1458
        %v1460 = vpop.f32.mrb[0].mxu0
        %v1461 = vadd.f32 %v1364, %v1460
        %v1462 = vpop.f32.mrb[0].mxu0
        %v1463 = vadd.f32 %v1366, %v1462
        %1464 = vmatprep.mubr.f32.mxu0 0.0
        %v1465 = vand.u32 %v202, 4294901760
        %1466 = vmatmul.mubr.f32.gmra.mrb[0].mxu0 %v1465
        %v1467 = vpop.f32.mrb[0].mxu0
        %v1468 = vadd.f32 %v1371, %v1467
        %v1469 = vpop.f32.mrb[0].mxu0
        %v1470 = vadd.f32 %v1373, %v1469
        %1471 = vmatprep.mubr.f32.mxu0 0.0
        %v1472 = vand.u32 %v205, 4294901760
        %1473 = vmatmul.mubr.f32.gmra.mrb[0].mxu0 %v1472
        %v1474 = vpop.f32.mrb[0].mxu0
        %v1475 = vadd.f32 %v1378, %v1474
        %v1476 = vpop.f32.mrb[0].mxu0
        %v1477 = vadd.f32 %v1380, %v1476
        %1478 = vmatprep.mubr.f32.mxu0 0.0
        %v1479 = vand.u32 %v208, 4294901760
        %1480 = vmatmul.mubr.f32.gmra.mrb[0].mxu0 %v1479
        %v1481 = vpop.f32.mrb[0].mxu0
        %v1482 = vadd.f32 %v1385, %v1481
        %v1483 = vpop.f32.mrb[0].mxu0
        %v1484 = vadd.f32 %v1387, %v1483
        %1485 = vdwg.mxu0
        %1486 = vst [vmem:[%s180] sm:$0xff] %v823
        %1487 = vst [vmem:[%s180 + $0x8] sm:$0xff] %v825
        %1488 = vst [vmem:[%s180 + $0x10] sm:$0xff] %v1461
        %1489 = vst [vmem:[%s180 + $0x18] sm:$0xff] %v1463
        %1490 = vst [vmem:[%s180 + $0x20] sm:$0xff] %v830
        %1491 = vst [vmem:[%s180 + $0x28] sm:$0xff] %v832
        %1492 = vst [vmem:[%s180 + $0x30] sm:$0xff] %v1468
        %1493 = vst [vmem:[%s180 + $0x38] sm:$0xff] %v1470
        %1494 = vst [vmem:[%s180 + $0x40] sm:$0xff] %v837
        %1495 = vst [vmem:[%s180 + $0x48] sm:$0xff] %v839
        %1496 = vst [vmem:[%s180 + $0x50] sm:$0xff] %v1475
        %1497 = vst [vmem:[%s180 + $0x58] sm:$0xff] %v1477
        %1498 = vst [vmem:[%s180 + $0x60] sm:$0xff] %v844
        %1499 = vst [vmem:[%s180 + $0x68] sm:$0xff] %v846
        %1500 = vst [vmem:[%s180 + $0x70] sm:$0xff] %v1482
        %1501 = vst [vmem:[%s180 + $0x78] sm:$0xff] %v1484
        %s1502 = scalar_lea.vmem %s160, 64 [#allocation2]
        %v1503 = vld [vmem:[%s1502] sm:$0xff]
        %v1504 = vld [vmem:[%s1502 + $0x8] sm:$0xff]
        %v1505 = vld [vmem:[%s1502 + $0x10] sm:$0xff]
        %v1506 = vld [vmem:[%s1502 + $0x18] sm:$0xff]
        %v1507 = vld [vmem:[%s1502 + $0x20] sm:$0xff]
        %v1508 = vld [vmem:[%s1502 + $0x28] sm:$0xff]
        %v1509 = vld [vmem:[%s1502 + $0x30] sm:$0xff]
        %v1510 = vld [vmem:[%s1502 + $0x38] sm:$0xff]
        %v1511 = vand.u32 %v1504, 4294901760
        %1512 = vmatprep.subr.mxu0 %v1511
        %v1513 = vand.u32 %v1503, 4294901760
        %1514 = vmatpush1.msra.mxu0 %v1513
        %v1515 = vand.u32 %v1508, 4294901760
        %1516 = vmatprep.subr.mxu0 %v1515
        %v1517 = vand.u32 %v1507, 4294901760
        %1518 = vmatpush1.msra.mxu0 %v1517
        %1519 = vmatprep.subr.mxu0 0.0
        %1520 = vmatpush1.msra.mxu0 0.0
        %1521 = vmatprep.subr.mxu0 0.0
        %1522 = vmatpush1.msra.mxu0 0.0
        %1523 = vmatprep.subr.mxu0 0.0
        %1524 = vmatpush1.msra.mxu0 0.0
        %1525 = vmatprep.subr.mxu0 0.0
        %1526 = vmatpush1.msra.mxu0 0.0
        %1527 = vmatprep.subr.mxu0 0.0
        %1528 = vmatpush1.msra.mxu0 0.0
        %1529 = vmatprep.subr.mxu0 0.0
        %1530 = vmatpush1.msra.mxu0 0.0
        %1531 = vmatprep.subr.mxu0 0.0
        %1532 = vmatpush1.msra.mxu0 0.0
        %1533 = vmatprep.subr.mxu0 0.0
        %1534 = vmatpush1.msra.mxu0 0.0
        %1535 = vmatprep.subr.mxu0 0.0
        %1536 = vmatpush1.msra.mxu0 0.0
        %1537 = vmatprep.subr.mxu0 0.0
        %1538 = vmatpush1.msra.mxu0 0.0
        %1539 = vmatprep.subr.mxu0 0.0
        %1540 = vmatpush1.msra.mxu0 0.0
        %1541 = vmatprep.subr.mxu0 0.0
        %1542 = vmatpush1.msra.mxu0 0.0
        %1543 = vmatprep.subr.mxu0 0.0
        %1544 = vmatpush1.msra.mxu0 0.0
        %1545 = vmatprep.subr.mxu0 0.0
        %1546 = vmatpush1.msra.mxu0 0.0
        %1547 = vmatprep.subr.mxu0 0.0
        %1548 = vmatpush1.msra.mxu0 0.0
        %1549 = vmatprep.subr.mxu0 0.0
        %1550 = vmatpush1.msra.mxu0 0.0
        %1551 = vmatprep.subr.mxu0 0.0
        %1552 = vmatpush1.msra.mxu0 0.0
        %1553 = vmatprep.subr.mxu0 0.0
        %1554 = vmatpush1.msra.mxu0 0.0
        %1555 = vmatprep.subr.mxu0 0.0
        %1556 = vmatpush1.msra.mxu0 0.0
        %1557 = vmatprep.subr.mxu0 0.0
        %1558 = vmatpush1.msra.mxu0 0.0
        %1559 = vmatprep.subr.mxu0 0.0
        %1560 = vmatpush1.msra.mxu0 0.0
        %1561 = vmatprep.subr.mxu0 0.0
        %1562 = vmatpush1.msra.mxu0 0.0
        %1563 = vmatprep.subr.mxu0 0.0
        %1564 = vmatpush1.msra.mxu0 0.0
        %1565 = vmatprep.subr.mxu0 0.0
        %1566 = vmatpush1.msra.mxu0 0.0
        %1567 = vmatprep.subr.mxu0 0.0
        %1568 = vmatpush1.msra.mxu0 0.0
        %1569 = vmatprep.subr.mxu0 0.0
        %1570 = vmatpush1.msra.mxu0 0.0
        %1571 = vmatprep.subr.mxu0 0.0
        %1572 = vmatpush1.msra.mxu0 0.0
        %1573 = vmatprep.subr.mxu0 0.0
        %1574 = vmatpush1.msra.mxu0 0.0
        %1575 = vmatprep.subr.mxu0 0.0
        %1576 = vmatpush1.msra.mxu0 0.0
        %1577 = vmatprep.subr.mxu0 0.0
        %1578 = vmatpush1.msra.mxu0 0.0
        %1579 = vmatprep.mubr.f32.mxu0 0.0
        %v1580 = vand.u32 %v199, 4294901760
        %v1581 = vsub.f32 %v199, %v1580
        %v1582 = vand.u32 %v1581, 4294901760
        %v1583 = vsub.f32 %v1581, %v1582
        %v1584 = vand.u32 %v1583, 4294901760
        %1585 = vmatmul.mubr.f32.gmra.mrb[0].mxu0 %v1584
        %v1586 = vpop.f32.mrb[0].mxu0
        %v1587 = vadd.f32 0.0, %v1586
        %v1588 = vpop.f32.mrb[0].mxu0
        %v1589 = vadd.f32 0.0, %v1588
        %1590 = vmatprep.mubr.f32.mxu0 0.0
        %v1591 = vand.u32 %v202, 4294901760
        %v1592 = vsub.f32 %v202, %v1591
        %v1593 = vand.u32 %v1592, 4294901760
        %v1594 = vsub.f32 %v1592, %v1593
        %v1595 = vand.u32 %v1594, 4294901760
        %1596 = vmatmul.mubr.f32.gmra.mrb[0].mxu0 %v1595
        %v1597 = vpop.f32.mrb[0].mxu0
        %v1598 = vadd.f32 0.0, %v1597
        %v1599 = vpop.f32.mrb[0].mxu0
        %v1600 = vadd.f32 0.0, %v1599
        %1601 = vmatprep.mubr.f32.mxu0 0.0
        %v1602 = vand.u32 %v205, 4294901760
        %v1603 = vsub.f32 %v205, %v1602
        %v1604 = vand.u32 %v1603, 4294901760
        %v1605 = vsub.f32 %v1603, %v1604
        %v1606 = vand.u32 %v1605, 4294901760
        %1607 = vmatmul.mubr.f32.gmra.mrb[0].mxu0 %v1606
        %v1608 = vpop.f32.mrb[0].mxu0
        %v1609 = vadd.f32 0.0, %v1608
        %v1610 = vpop.f32.mrb[0].mxu0
        %v1611 = vadd.f32 0.0, %v1610
        %1612 = vmatprep.mubr.f32.mxu0 0.0
        %v1613 = vand.u32 %v208, 4294901760
        %v1614 = vsub.f32 %v208, %v1613
        %v1615 = vand.u32 %v1614, 4294901760
        %v1616 = vsub.f32 %v1614, %v1615
        %v1617 = vand.u32 %v1616, 4294901760
        %1618 = vmatmul.mubr.f32.gmra.mrb[0].mxu0 %v1617
        %v1619 = vpop.f32.mrb[0].mxu0
        %v1620 = vadd.f32 0.0, %v1619
        %v1621 = vpop.f32.mrb[0].mxu0
        %v1622 = vadd.f32 0.0, %v1621
        %1623 = vdwg.mxu0
        %v1624 = vand.u32 %v1504, 4294901760
        %v1625 = vsub.f32 %v1504, %v1624
        %v1626 = vand.u32 %v1625, 4294901760
        %v1627 = vsub.f32 %v1625, %v1626
        %v1628 = vand.u32 %v1627, 4294901760
        %1629 = vmatprep.subr.mxu0 %v1628
        %v1630 = vand.u32 %v1503, 4294901760
        %v1631 = vsub.f32 %v1503, %v1630
        %v1632 = vand.u32 %v1631, 4294901760
        %v1633 = vsub.f32 %v1631, %v1632
        %v1634 = vand.u32 %v1633, 4294901760
        %1635 = vmatpush1.msra.mxu0 %v1634
        %v1636 = vand.u32 %v1508, 4294901760
        %v1637 = vsub.f32 %v1508, %v1636
        %v1638 = vand.u32 %v1637, 4294901760
        %v1639 = vsub.f32 %v1637, %v1638
        %v1640 = vand.u32 %v1639, 4294901760
        %1641 = vmatprep.subr.mxu0 %v1640
        %v1642 = vand.u32 %v1507, 4294901760
        %v1643 = vsub.f32 %v1507, %v1642
        %v1644 = vand.u32 %v1643, 4294901760
        %v1645 = vsub.f32 %v1643, %v1644
        %v1646 = vand.u32 %v1645, 4294901760
        %1647 = vmatpush1.msra.mxu0 %v1646
        %1648 = vmatprep.subr.mxu0 0.0
        %1649 = vmatpush1.msra.mxu0 0.0
        %1650 = vmatprep.subr.mxu0 0.0
        %1651 = vmatpush1.msra.mxu0 0.0
        %1652 = vmatprep.subr.mxu0 0.0
        %1653 = vmatpush1.msra.mxu0 0.0
        %1654 = vmatprep.subr.mxu0 0.0
        %1655 = vmatpush1.msra.mxu0 0.0
        %1656 = vmatprep.subr.mxu0 0.0
        %1657 = vmatpush1.msra.mxu0 0.0
        %1658 = vmatprep.subr.mxu0 0.0
        %1659 = vmatpush1.msra.mxu0 0.0
        %1660 = vmatprep.subr.mxu0 0.0
        %1661 = vmatpush1.msra.mxu0 0.0
        %1662 = vmatprep.subr.mxu0 0.0
        %1663 = vmatpush1.msra.mxu0 0.0
        %1664 = vmatprep.subr.mxu0 0.0
        %1665 = vmatpush1.msra.mxu0 0.0
        %1666 = vmatprep.subr.mxu0 0.0
        %1667 = vmatpush1.msra.mxu0 0.0
        %1668 = vmatprep.subr.mxu0 0.0
        %1669 = vmatpush1.msra.mxu0 0.0
        %1670 = vmatprep.subr.mxu0 0.0
        %1671 = vmatpush1.msra.mxu0 0.0
        %1672 = vmatprep.subr.mxu0 0.0
        %1673 = vmatpush1.msra.mxu0 0.0
        %1674 = vmatprep.subr.mxu0 0.0
        %1675 = vmatpush1.msra.mxu0 0.0
        %1676 = vmatprep.subr.mxu0 0.0
        %1677 = vmatpush1.msra.mxu0 0.0
        %1678 = vmatprep.subr.mxu0 0.0
        %1679 = vmatpush1.msra.mxu0 0.0
        %1680 = vmatprep.subr.mxu0 0.0
        %1681 = vmatpush1.msra.mxu0 0.0
        %1682 = vmatprep.subr.mxu0 0.0
        %1683 = vmatpush1.msra.mxu0 0.0
        %1684 = vmatprep.subr.mxu0 0.0
        %1685 = vmatpush1.msra.mxu0 0.0
        %1686 = vmatprep.subr.mxu0 0.0
        %1687 = vmatpush1.msra.mxu0 0.0
        %1688 = vmatprep.subr.mxu0 0.0
        %1689 = vmatpush1.msra.mxu0 0.0
        %1690 = vmatprep.subr.mxu0 0.0
        %1691 = vmatpush1.msra.mxu0 0.0
        %1692 = vmatprep.subr.mxu0 0.0
        %1693 = vmatpush1.msra.mxu0 0.0
        %1694 = vmatprep.subr.mxu0 0.0
        %1695 = vmatpush1.msra.mxu0 0.0
        %1696 = vmatprep.subr.mxu0 0.0
        %1697 = vmatpush1.msra.mxu0 0.0
        %1698 = vmatprep.subr.mxu0 0.0
        %1699 = vmatpush1.msra.mxu0 0.0
        %1700 = vmatprep.subr.mxu0 0.0
        %1701 = vmatpush1.msra.mxu0 0.0
        %1702 = vmatprep.subr.mxu0 0.0
        %1703 = vmatpush1.msra.mxu0 0.0
        %1704 = vmatprep.subr.mxu0 0.0
        %1705 = vmatpush1.msra.mxu0 0.0
        %1706 = vmatprep.subr.mxu0 0.0
        %1707 = vmatpush1.msra.mxu0 0.0
        %1708 = vmatprep.mubr.f32.mxu0 0.0
        %v1709 = vand.u32 %v199, 4294901760
        %1710 = vmatmul.mubr.f32.gmra.mrb[0].mxu0 %v1709
        %v1711 = vpop.f32.mrb[0].mxu0
        %v1712 = vadd.f32 %v1587, %v1711
        %v1713 = vpop.f32.mrb[0].mxu0
        %v1714 = vadd.f32 %v1589, %v1713
        %1715 = vmatprep.mubr.f32.mxu0 0.0
        %v1716 = vand.u32 %v202, 4294901760
        %1717 = vmatmul.mubr.f32.gmra.mrb[0].mxu0 %v1716
        %v1718 = vpop.f32.mrb[0].mxu0
        %v1719 = vadd.f32 %v1598, %v1718
        %v1720 = vpop.f32.mrb[0].mxu0
        %v1721 = vadd.f32 %v1600, %v1720
        %1722 = vmatprep.mubr.f32.mxu0 0.0
        %v1723 = vand.u32 %v205, 4294901760
        %1724 = vmatmul.mubr.f32.gmra.mrb[0].mxu0 %v1723
        %v1725 = vpop.f32.mrb[0].mxu0
        %v1726 = vadd.f32 %v1609, %v1725
        %v1727 = vpop.f32.mrb[0].mxu0
        %v1728 = vadd.f32 %v1611, %v1727
        %1729 = vmatprep.mubr.f32.mxu0 0.0
        %v1730 = vand.u32 %v208, 4294901760
        %1731 = vmatmul.mubr.f32.gmra.mrb[0].mxu0 %v1730
        %v1732 = vpop.f32.mrb[0].mxu0
        %v1733 = vadd.f32 %v1620, %v1732
        %v1734 = vpop.f32.mrb[0].mxu0
        %v1735 = vadd.f32 %v1622, %v1734
        %1736 = vdwg.mxu0
        %v1737 = vand.u32 %v1504, 4294901760
        %v1738 = vsub.f32 %v1504, %v1737
        %1739 = vmatprep.subr.mxu0 %v1738
        %v1740 = vand.u32 %v1503, 4294901760
        %v1741 = vsub.f32 %v1503, %v1740
        %1742 = vmatpush1.msra.mxu0 %v1741
        %v1743 = vand.u32 %v1508, 4294901760
        %v1744 = vsub.f32 %v1508, %v1743
        %1745 = vmatprep.subr.mxu0 %v1744
        %v1746 = vand.u32 %v1507, 4294901760
        %v1747 = vsub.f32 %v1507, %v1746
        %1748 = vmatpush1.msra.mxu0 %v1747
        %1749 = vmatprep.subr.mxu0 0.0
        %1750 = vmatpush1.msra.mxu0 0.0
        %1751 = vmatprep.subr.mxu0 0.0
        %1752 = vmatpush1.msra.mxu0 0.0
        %1753 = vmatprep.subr.mxu0 0.0
        %1754 = vmatpush1.msra.mxu0 0.0
        %1755 = vmatprep.subr.mxu0 0.0
        %1756 = vmatpush1.msra.mxu0 0.0
        %1757 = vmatprep.subr.mxu0 0.0
        %1758 = vmatpush1.msra.mxu0 0.0
        %1759 = vmatprep.subr.mxu0 0.0
        %1760 = vmatpush1.msra.mxu0 0.0
        %1761 = vmatprep.subr.mxu0 0.0
        %1762 = vmatpush1.msra.mxu0 0.0
        %1763 = vmatprep.subr.mxu0 0.0
        %1764 = vmatpush1.msra.mxu0 0.0
        %1765 = vmatprep.subr.mxu0 0.0
        %1766 = vmatpush1.msra.mxu0 0.0
        %1767 = vmatprep.subr.mxu0 0.0
        %1768 = vmatpush1.msra.mxu0 0.0
        %1769 = vmatprep.subr.mxu0 0.0
        %1770 = vmatpush1.msra.mxu0 0.0
        %1771 = vmatprep.subr.mxu0 0.0
        %1772 = vmatpush1.msra.mxu0 0.0
        %1773 = vmatprep.subr.mxu0 0.0
        %1774 = vmatpush1.msra.mxu0 0.0
        %1775 = vmatprep.subr.mxu0 0.0
        %1776 = vmatpush1.msra.mxu0 0.0
        %1777 = vmatprep.subr.mxu0 0.0
        %1778 = vmatpush1.msra.mxu0 0.0
        %1779 = vmatprep.subr.mxu0 0.0
        %1780 = vmatpush1.msra.mxu0 0.0
        %1781 = vmatprep.subr.mxu0 0.0
        %1782 = vmatpush1.msra.mxu0 0.0
        %1783 = vmatprep.subr.mxu0 0.0
        %1784 = vmatpush1.msra.mxu0 0.0
        %1785 = vmatprep.subr.mxu0 0.0
        %1786 = vmatpush1.msra.mxu0 0.0
        %1787 = vmatprep.subr.mxu0 0.0
        %1788 = vmatpush1.msra.mxu0 0.0
        %1789 = vmatprep.subr.mxu0 0.0
        %1790 = vmatpush1.msra.mxu0 0.0
        %1791 = vmatprep.subr.mxu0 0.0
        %1792 = vmatpush1.msra.mxu0 0.0
        %1793 = vmatprep.subr.mxu0 0.0
        %1794 = vmatpush1.msra.mxu0 0.0
        %1795 = vmatprep.subr.mxu0 0.0
        %1796 = vmatpush1.msra.mxu0 0.0
        %1797 = vmatprep.subr.mxu0 0.0
        %1798 = vmatpush1.msra.mxu0 0.0
        %1799 = vmatprep.subr.mxu0 0.0
        %1800 = vmatpush1.msra.mxu0 0.0
        %1801 = vmatprep.subr.mxu0 0.0
        %1802 = vmatpush1.msra.mxu0 0.0
        %1803 = vmatprep.subr.mxu0 0.0
        %1804 = vmatpush1.msra.mxu0 0.0
        %1805 = vmatprep.subr.mxu0 0.0
        %1806 = vmatpush1.msra.mxu0 0.0
        %1807 = vmatprep.subr.mxu0 0.0
        %1808 = vmatpush1.msra.mxu0 0.0
        %1809 = vmatprep.mubr.f32.mxu0 0.0
        %v1810 = vand.u32 %v199, 4294901760
        %v1811 = vsub.f32 %v199, %v1810
        %1812 = vmatmul.mubr.f32.gmra.mrb[0].mxu0 %v1811
        %v1813 = vpop.f32.mrb[0].mxu0
        %v1814 = vadd.f32 %v1712, %v1813
        %v1815 = vpop.f32.mrb[0].mxu0
        %v1816 = vadd.f32 %v1714, %v1815
        %1817 = vmatprep.mubr.f32.mxu0 0.0
        %v1818 = vand.u32 %v202, 4294901760
        %v1819 = vsub.f32 %v202, %v1818
        %1820 = vmatmul.mubr.f32.gmra.mrb[0].mxu0 %v1819
        %v1821 = vpop.f32.mrb[0].mxu0
        %v1822 = vadd.f32 %v1719, %v1821
        %v1823 = vpop.f32.mrb[0].mxu0
        %v1824 = vadd.f32 %v1721, %v1823
        %1825 = vmatprep.mubr.f32.mxu0 0.0
        %v1826 = vand.u32 %v205, 4294901760
        %v1827 = vsub.f32 %v205, %v1826
        %1828 = vmatmul.mubr.f32.gmra.mrb[0].mxu0 %v1827
        %v1829 = vpop.f32.mrb[0].mxu0
        %v1830 = vadd.f32 %v1726, %v1829
        %v1831 = vpop.f32.mrb[0].mxu0
        %v1832 = vadd.f32 %v1728, %v1831
        %1833 = vmatprep.mubr.f32.mxu0 0.0
        %v1834 = vand.u32 %v208, 4294901760
        %v1835 = vsub.f32 %v208, %v1834
        %1836 = vmatmul.mubr.f32.gmra.mrb[0].mxu0 %v1835
        %v1837 = vpop.f32.mrb[0].mxu0
        %v1838 = vadd.f32 %v1733, %v1837
        %v1839 = vpop.f32.mrb[0].mxu0
        %v1840 = vadd.f32 %v1735, %v1839
        %1841 = vdwg.mxu0
        %v1842 = vand.u32 %v1504, 4294901760
        %1843 = vmatprep.subr.mxu0 %v1842
        %v1844 = vand.u32 %v1503, 4294901760
        %1845 = vmatpush1.msra.mxu0 %v1844
        %v1846 = vand.u32 %v1508, 4294901760
        %1847 = vmatprep.subr.mxu0 %v1846
        %v1848 = vand.u32 %v1507, 4294901760
        %1849 = vmatpush1.msra.mxu0 %v1848
        %1850 = vmatprep.subr.mxu0 0.0
        %1851 = vmatpush1.msra.mxu0 0.0
        %1852 = vmatprep.subr.mxu0 0.0
        %1853 = vmatpush1.msra.mxu0 0.0
        %1854 = vmatprep.subr.mxu0 0.0
        %1855 = vmatpush1.msra.mxu0 0.0
        %1856 = vmatprep.subr.mxu0 0.0
        %1857 = vmatpush1.msra.mxu0 0.0
        %1858 = vmatprep.subr.mxu0 0.0
        %1859 = vmatpush1.msra.mxu0 0.0
        %1860 = vmatprep.subr.mxu0 0.0
        %1861 = vmatpush1.msra.mxu0 0.0
        %1862 = vmatprep.subr.mxu0 0.0
        %1863 = vmatpush1.msra.mxu0 0.0
        %1864 = vmatprep.subr.mxu0 0.0
        %1865 = vmatpush1.msra.mxu0 0.0
        %1866 = vmatprep.subr.mxu0 0.0
        %1867 = vmatpush1.msra.mxu0 0.0
        %1868 = vmatprep.subr.mxu0 0.0
        %1869 = vmatpush1.msra.mxu0 0.0
        %1870 = vmatprep.subr.mxu0 0.0
        %1871 = vmatpush1.msra.mxu0 0.0
        %1872 = vmatprep.subr.mxu0 0.0
        %1873 = vmatpush1.msra.mxu0 0.0
        %1874 = vmatprep.subr.mxu0 0.0
        %1875 = vmatpush1.msra.mxu0 0.0
        %1876 = vmatprep.subr.mxu0 0.0
        %1877 = vmatpush1.msra.mxu0 0.0
        %1878 = vmatprep.subr.mxu0 0.0
        %1879 = vmatpush1.msra.mxu0 0.0
        %1880 = vmatprep.subr.mxu0 0.0
        %1881 = vmatpush1.msra.mxu0 0.0
        %1882 = vmatprep.subr.mxu0 0.0
        %1883 = vmatpush1.msra.mxu0 0.0
        %1884 = vmatprep.subr.mxu0 0.0
        %1885 = vmatpush1.msra.mxu0 0.0
        %1886 = vmatprep.subr.mxu0 0.0
        %1887 = vmatpush1.msra.mxu0 0.0
        %1888 = vmatprep.subr.mxu0 0.0
        %1889 = vmatpush1.msra.mxu0 0.0
        %1890 = vmatprep.subr.mxu0 0.0
        %1891 = vmatpush1.msra.mxu0 0.0
        %1892 = vmatprep.subr.mxu0 0.0
        %1893 = vmatpush1.msra.mxu0 0.0
        %1894 = vmatprep.subr.mxu0 0.0
        %1895 = vmatpush1.msra.mxu0 0.0
        %1896 = vmatprep.subr.mxu0 0.0
        %1897 = vmatpush1.msra.mxu0 0.0
        %1898 = vmatprep.subr.mxu0 0.0
        %1899 = vmatpush1.msra.mxu0 0.0
        %1900 = vmatprep.subr.mxu0 0.0
        %1901 = vmatpush1.msra.mxu0 0.0
        %1902 = vmatprep.subr.mxu0 0.0
        %1903 = vmatpush1.msra.mxu0 0.0
        %1904 = vmatprep.subr.mxu0 0.0
        %1905 = vmatpush1.msra.mxu0 0.0
        %1906 = vmatprep.subr.mxu0 0.0
        %1907 = vmatpush1.msra.mxu0 0.0
        %1908 = vmatprep.subr.mxu0 0.0
        %1909 = vmatpush1.msra.mxu0 0.0
        %1910 = vmatprep.mubr.f32.mxu0 0.0
        %v1911 = vand.u32 %v199, 4294901760
        %v1912 = vsub.f32 %v199, %v1911
        %v1913 = vand.u32 %v1912, 4294901760
        %1914 = vmatmul.mubr.f32.gmra.mrb[0].mxu0 %v1913
        %v1915 = vpop.f32.mrb[0].mxu0
        %v1916 = vadd.f32 %v1814, %v1915
        %v1917 = vpop.f32.mrb[0].mxu0
        %v1918 = vadd.f32 %v1816, %v1917
        %1919 = vmatprep.mubr.f32.mxu0 0.0
        %v1920 = vand.u32 %v202, 4294901760
        %v1921 = vsub.f32 %v202, %v1920
        %v1922 = vand.u32 %v1921, 4294901760
        %1923 = vmatmul.mubr.f32.gmra.mrb[0].mxu0 %v1922
        %v1924 = vpop.f32.mrb[0].mxu0
        %v1925 = vadd.f32 %v1822, %v1924
        %v1926 = vpop.f32.mrb[0].mxu0
        %v1927 = vadd.f32 %v1824, %v1926
        %1928 = vmatprep.mubr.f32.mxu0 0.0
        %v1929 = vand.u32 %v205, 4294901760
        %v1930 = vsub.f32 %v205, %v1929
        %v1931 = vand.u32 %v1930, 4294901760
        %1932 = vmatmul.mubr.f32.gmra.mrb[0].mxu0 %v1931
        %v1933 = vpop.f32.mrb[0].mxu0
        %v1934 = vadd.f32 %v1830, %v1933
        %v1935 = vpop.f32.mrb[0].mxu0
        %v1936 = vadd.f32 %v1832, %v1935
        %1937 = vmatprep.mubr.f32.mxu0 0.0
        %v1938 = vand.u32 %v208, 4294901760
        %v1939 = vsub.f32 %v208, %v1938
        %v1940 = vand.u32 %v1939, 4294901760
        %1941 = vmatmul.mubr.f32.gmra.mrb[0].mxu0 %v1940
        %v1942 = vpop.f32.mrb[0].mxu0
        %v1943 = vadd.f32 %v1838, %v1942
        %v1944 = vpop.f32.mrb[0].mxu0
        %v1945 = vadd.f32 %v1840, %v1944
        %1946 = vdwg.mxu0
        %v1947 = vand.u32 %v1504, 4294901760
        %v1948 = vsub.f32 %v1504, %v1947
        %v1949 = vand.u32 %v1948, 4294901760
        %1950 = vmatprep.subr.mxu0 %v1949
        %v1951 = vand.u32 %v1503, 4294901760
        %v1952 = vsub.f32 %v1503, %v1951
        %v1953 = vand.u32 %v1952, 4294901760
        %1954 = vmatpush1.msra.mxu0 %v1953
        %v1955 = vand.u32 %v1508, 4294901760
        %v1956 = vsub.f32 %v1508, %v1955
        %v1957 = vand.u32 %v1956, 4294901760
        %1958 = vmatprep.subr.mxu0 %v1957
        %v1959 = vand.u32 %v1507, 4294901760
        %v1960 = vsub.f32 %v1507, %v1959
        %v1961 = vand.u32 %v1960, 4294901760
        %1962 = vmatpush1.msra.mxu0 %v1961
        %1963 = vmatprep.subr.mxu0 0.0
        %1964 = vmatpush1.msra.mxu0 0.0
        %1965 = vmatprep.subr.mxu0 0.0
        %1966 = vmatpush1.msra.mxu0 0.0
        %1967 = vmatprep.subr.mxu0 0.0
        %1968 = vmatpush1.msra.mxu0 0.0
        %1969 = vmatprep.subr.mxu0 0.0
        %1970 = vmatpush1.msra.mxu0 0.0
        %1971 = vmatprep.subr.mxu0 0.0
        %1972 = vmatpush1.msra.mxu0 0.0
        %1973 = vmatprep.subr.mxu0 0.0
        %1974 = vmatpush1.msra.mxu0 0.0
        %1975 = vmatprep.subr.mxu0 0.0
        %1976 = vmatpush1.msra.mxu0 0.0
        %1977 = vmatprep.subr.mxu0 0.0
        %1978 = vmatpush1.msra.mxu0 0.0
        %1979 = vmatprep.subr.mxu0 0.0
        %1980 = vmatpush1.msra.mxu0 0.0
        %1981 = vmatprep.subr.mxu0 0.0
        %1982 = vmatpush1.msra.mxu0 0.0
        %1983 = vmatprep.subr.mxu0 0.0
        %1984 = vmatpush1.msra.mxu0 0.0
        %1985 = vmatprep.subr.mxu0 0.0
        %1986 = vmatpush1.msra.mxu0 0.0
        %1987 = vmatprep.subr.mxu0 0.0
        %1988 = vmatpush1.msra.mxu0 0.0
        %1989 = vmatprep.subr.mxu0 0.0
        %1990 = vmatpush1.msra.mxu0 0.0
        %1991 = vmatprep.subr.mxu0 0.0
        %1992 = vmatpush1.msra.mxu0 0.0
        %1993 = vmatprep.subr.mxu0 0.0
        %1994 = vmatpush1.msra.mxu0 0.0
        %1995 = vmatprep.subr.mxu0 0.0
        %1996 = vmatpush1.msra.mxu0 0.0
        %1997 = vmatprep.subr.mxu0 0.0
        %1998 = vmatpush1.msra.mxu0 0.0
        %1999 = vmatprep.subr.mxu0 0.0
        %2000 = vmatpush1.msra.mxu0 0.0
        %2001 = vmatprep.subr.mxu0 0.0
        %2002 = vmatpush1.msra.mxu0 0.0
        %2003 = vmatprep.subr.mxu0 0.0
        %2004 = vmatpush1.msra.mxu0 0.0
        %2005 = vmatprep.subr.mxu0 0.0
        %2006 = vmatpush1.msra.mxu0 0.0
        %2007 = vmatprep.subr.mxu0 0.0
        %2008 = vmatpush1.msra.mxu0 0.0
        %2009 = vmatprep.subr.mxu0 0.0
        %2010 = vmatpush1.msra.mxu0 0.0
        %2011 = vmatprep.subr.mxu0 0.0
        %2012 = vmatpush1.msra.mxu0 0.0
        %2013 = vmatprep.subr.mxu0 0.0
        %2014 = vmatpush1.msra.mxu0 0.0
        %2015 = vmatprep.subr.mxu0 0.0
        %2016 = vmatpush1.msra.mxu0 0.0
        %2017 = vmatprep.subr.mxu0 0.0
        %2018 = vmatpush1.msra.mxu0 0.0
        %2019 = vmatprep.subr.mxu0 0.0
        %2020 = vmatpush1.msra.mxu0 0.0
        %2021 = vmatprep.subr.mxu0 0.0
        %2022 = vmatpush1.msra.mxu0 0.0
        %2023 = vmatprep.mubr.f32.mxu0 0.0
        %v2024 = vand.u32 %v199, 4294901760
        %2025 = vmatmul.mubr.f32.gmra.mrb[0].mxu0 %v2024
        %v2026 = vpop.f32.mrb[0].mxu0
        %v2027 = vadd.f32 %v1916, %v2026
        %v2028 = vpop.f32.mrb[0].mxu0
        %v2029 = vadd.f32 %v1918, %v2028
        %2030 = vmatprep.mubr.f32.mxu0 0.0
        %v2031 = vand.u32 %v202, 4294901760
        %2032 = vmatmul.mubr.f32.gmra.mrb[0].mxu0 %v2031
        %v2033 = vpop.f32.mrb[0].mxu0
        %v2034 = vadd.f32 %v1925, %v2033
        %v2035 = vpop.f32.mrb[0].mxu0
        %v2036 = vadd.f32 %v1927, %v2035
        %2037 = vmatprep.mubr.f32.mxu0 0.0
        %v2038 = vand.u32 %v205, 4294901760
        %2039 = vmatmul.mubr.f32.gmra.mrb[0].mxu0 %v2038
        %v2040 = vpop.f32.mrb[0].mxu0
        %v2041 = vadd.f32 %v1934, %v2040
        %v2042 = vpop.f32.mrb[0].mxu0
        %v2043 = vadd.f32 %v1936, %v2042
        %2044 = vmatprep.mubr.f32.mxu0 0.0
        %v2045 = vand.u32 %v208, 4294901760
        %2046 = vmatmul.mubr.f32.gmra.mrb[0].mxu0 %v2045
        %v2047 = vpop.f32.mrb[0].mxu0
        %v2048 = vadd.f32 %v1943, %v2047
        %v2049 = vpop.f32.mrb[0].mxu0
        %v2050 = vadd.f32 %v1945, %v2049
        %2051 = vdwg.mxu0
        %v2052 = vand.u32 %v1504, 4294901760
        %2053 = vmatprep.subr.mxu0 %v2052
        %v2054 = vand.u32 %v1503, 4294901760
        %2055 = vmatpush1.msra.mxu0 %v2054
        %v2056 = vand.u32 %v1508, 4294901760
        %2057 = vmatprep.subr.mxu0 %v2056
        %v2058 = vand.u32 %v1507, 4294901760
        %2059 = vmatpush1.msra.mxu0 %v2058
        %2060 = vmatprep.subr.mxu0 0.0
        %2061 = vmatpush1.msra.mxu0 0.0
        %2062 = vmatprep.subr.mxu0 0.0
        %2063 = vmatpush1.msra.mxu0 0.0
        %2064 = vmatprep.subr.mxu0 0.0
        %2065 = vmatpush1.msra.mxu0 0.0
        %2066 = vmatprep.subr.mxu0 0.0
        %2067 = vmatpush1.msra.mxu0 0.0
        %2068 = vmatprep.subr.mxu0 0.0
        %2069 = vmatpush1.msra.mxu0 0.0
        %2070 = vmatprep.subr.mxu0 0.0
        %2071 = vmatpush1.msra.mxu0 0.0
        %2072 = vmatprep.subr.mxu0 0.0
        %2073 = vmatpush1.msra.mxu0 0.0
        %2074 = vmatprep.subr.mxu0 0.0
        %2075 = vmatpush1.msra.mxu0 0.0
        %2076 = vmatprep.subr.mxu0 0.0
        %2077 = vmatpush1.msra.mxu0 0.0
        %2078 = vmatprep.subr.mxu0 0.0
        %2079 = vmatpush1.msra.mxu0 0.0
        %2080 = vmatprep.subr.mxu0 0.0
        %2081 = vmatpush1.msra.mxu0 0.0
        %2082 = vmatprep.subr.mxu0 0.0
        %2083 = vmatpush1.msra.mxu0 0.0
        %2084 = vmatprep.subr.mxu0 0.0
        %2085 = vmatpush1.msra.mxu0 0.0
        %2086 = vmatprep.subr.mxu0 0.0
        %2087 = vmatpush1.msra.mxu0 0.0
        %2088 = vmatprep.subr.mxu0 0.0
        %2089 = vmatpush1.msra.mxu0 0.0
        %2090 = vmatprep.subr.mxu0 0.0
        %2091 = vmatpush1.msra.mxu0 0.0
        %2092 = vmatprep.subr.mxu0 0.0
        %2093 = vmatpush1.msra.mxu0 0.0
        %2094 = vmatprep.subr.mxu0 0.0
        %2095 = vmatpush1.msra.mxu0 0.0
        %2096 = vmatprep.subr.mxu0 0.0
        %2097 = vmatpush1.msra.mxu0 0.0
        %2098 = vmatprep.subr.mxu0 0.0
        %2099 = vmatpush1.msra.mxu0 0.0
        %2100 = vmatprep.subr.mxu0 0.0
        %2101 = vmatpush1.msra.mxu0 0.0
        %2102 = vmatprep.subr.mxu0 0.0
        %2103 = vmatpush1.msra.mxu0 0.0
        %2104 = vmatprep.subr.mxu0 0.0
        %2105 = vmatpush1.msra.mxu0 0.0
        %2106 = vmatprep.subr.mxu0 0.0
        %2107 = vmatpush1.msra.mxu0 0.0
        %2108 = vmatprep.subr.mxu0 0.0
        %2109 = vmatpush1.msra.mxu0 0.0
        %2110 = vmatprep.subr.mxu0 0.0
        %2111 = vmatpush1.msra.mxu0 0.0
        %2112 = vmatprep.subr.mxu0 0.0
        %2113 = vmatpush1.msra.mxu0 0.0
        %2114 = vmatprep.subr.mxu0 0.0
        %2115 = vmatpush1.msra.mxu0 0.0
        %2116 = vmatprep.subr.mxu0 0.0
        %2117 = vmatpush1.msra.mxu0 0.0
        %2118 = vmatprep.subr.mxu0 0.0
        %2119 = vmatpush1.msra.mxu0 0.0
        %2120 = vmatprep.mubr.f32.mxu0 0.0
        %v2121 = vand.u32 %v199, 4294901760
        %2122 = vmatmul.mubr.f32.gmra.mrb[0].mxu0 %v2121
        %v2123 = vpop.f32.mrb[0].mxu0
        %v2124 = vadd.f32 %v2027, %v2123
        %v2125 = vpop.f32.mrb[0].mxu0
        %v2126 = vadd.f32 %v2029, %v2125
        %2127 = vmatprep.mubr.f32.mxu0 0.0
        %v2128 = vand.u32 %v202, 4294901760
        %2129 = vmatmul.mubr.f32.gmra.mrb[0].mxu0 %v2128
        %v2130 = vpop.f32.mrb[0].mxu0
        %v2131 = vadd.f32 %v2034, %v2130
        %v2132 = vpop.f32.mrb[0].mxu0
        %v2133 = vadd.f32 %v2036, %v2132
        %2134 = vmatprep.mubr.f32.mxu0 0.0
        %v2135 = vand.u32 %v205, 4294901760
        %2136 = vmatmul.mubr.f32.gmra.mrb[0].mxu0 %v2135
        %v2137 = vpop.f32.mrb[0].mxu0
        %v2138 = vadd.f32 %v2041, %v2137
        %v2139 = vpop.f32.mrb[0].mxu0
        %v2140 = vadd.f32 %v2043, %v2139
        %2141 = vmatprep.mubr.f32.mxu0 0.0
        %v2142 = vand.u32 %v208, 4294901760
        %2143 = vmatmul.mubr.f32.gmra.mrb[0].mxu0 %v2142
        %v2144 = vpop.f32.mrb[0].mxu0
        %v2145 = vadd.f32 %v2048, %v2144
        %v2146 = vpop.f32.mrb[0].mxu0
        %v2147 = vadd.f32 %v2050, %v2146
        %2148 = vdwg.mxu0
        %v2149 = vand.u32 %v1506, 4294901760
        %2150 = vmatprep.subr.mxu0 %v2149
        %v2151 = vand.u32 %v1505, 4294901760
        %2152 = vmatpush1.msra.mxu0 %v2151
        %v2153 = vand.u32 %v1510, 4294901760
        %2154 = vmatprep.subr.mxu0 %v2153
        %v2155 = vand.u32 %v1509, 4294901760
        %2156 = vmatpush1.msra.mxu0 %v2155
        %2157 = vmatprep.subr.mxu0 0.0
        %2158 = vmatpush1.msra.mxu0 0.0
        %2159 = vmatprep.subr.mxu0 0.0
        %2160 = vmatpush1.msra.mxu0 0.0
        %2161 = vmatprep.subr.mxu0 0.0
        %2162 = vmatpush1.msra.mxu0 0.0
        %2163 = vmatprep.subr.mxu0 0.0
        %2164 = vmatpush1.msra.mxu0 0.0
        %2165 = vmatprep.subr.mxu0 0.0
        %2166 = vmatpush1.msra.mxu0 0.0
        %2167 = vmatprep.subr.mxu0 0.0
        %2168 = vmatpush1.msra.mxu0 0.0
        %2169 = vmatprep.subr.mxu0 0.0
        %2170 = vmatpush1.msra.mxu0 0.0
        %2171 = vmatprep.subr.mxu0 0.0
        %2172 = vmatpush1.msra.mxu0 0.0
        %2173 = vmatprep.subr.mxu0 0.0
        %2174 = vmatpush1.msra.mxu0 0.0
        %2175 = vmatprep.subr.mxu0 0.0
        %2176 = vmatpush1.msra.mxu0 0.0
        %2177 = vmatprep.subr.mxu0 0.0
        %2178 = vmatpush1.msra.mxu0 0.0
        %2179 = vmatprep.subr.mxu0 0.0
        %2180 = vmatpush1.msra.mxu0 0.0
        %2181 = vmatprep.subr.mxu0 0.0
        %2182 = vmatpush1.msra.mxu0 0.0
        %2183 = vmatprep.subr.mxu0 0.0
        %2184 = vmatpush1.msra.mxu0 0.0
        %2185 = vmatprep.subr.mxu0 0.0
        %2186 = vmatpush1.msra.mxu0 0.0
        %2187 = vmatprep.subr.mxu0 0.0
        %2188 = vmatpush1.msra.mxu0 0.0
        %2189 = vmatprep.subr.mxu0 0.0
        %2190 = vmatpush1.msra.mxu0 0.0
        %2191 = vmatprep.subr.mxu0 0.0
        %2192 = vmatpush1.msra.mxu0 0.0
        %2193 = vmatprep.subr.mxu0 0.0
        %2194 = vmatpush1.msra.mxu0 0.0
        %2195 = vmatprep.subr.mxu0 0.0
        %2196 = vmatpush1.msra.mxu0 0.0
        %2197 = vmatprep.subr.mxu0 0.0
        %2198 = vmatpush1.msra.mxu0 0.0
        %2199 = vmatprep.subr.mxu0 0.0
        %2200 = vmatpush1.msra.mxu0 0.0
        %2201 = vmatprep.subr.mxu0 0.0
        %2202 = vmatpush1.msra.mxu0 0.0
        %2203 = vmatprep.subr.mxu0 0.0
        %2204 = vmatpush1.msra.mxu0 0.0
        %2205 = vmatprep.subr.mxu0 0.0
        %2206 = vmatpush1.msra.mxu0 0.0
        %2207 = vmatprep.subr.mxu0 0.0
        %2208 = vmatpush1.msra.mxu0 0.0
        %2209 = vmatprep.subr.mxu0 0.0
        %2210 = vmatpush1.msra.mxu0 0.0
        %2211 = vmatprep.subr.mxu0 0.0
        %2212 = vmatpush1.msra.mxu0 0.0
        %2213 = vmatprep.subr.mxu0 0.0
        %2214 = vmatpush1.msra.mxu0 0.0
        %2215 = vmatprep.subr.mxu0 0.0
        %2216 = vmatpush1.msra.mxu0 0.0
        %2217 = vmatprep.mubr.f32.mxu0 0.0
        %v2218 = vand.u32 %v199, 4294901760
        %v2219 = vsub.f32 %v199, %v2218
        %v2220 = vand.u32 %v2219, 4294901760
        %v2221 = vsub.f32 %v2219, %v2220
        %v2222 = vand.u32 %v2221, 4294901760
        %2223 = vmatmul.mubr.f32.gmra.mrb[0].mxu0 %v2222
        %v2224 = vpop.f32.mrb[0].mxu0
        %v2225 = vadd.f32 0.0, %v2224
        %v2226 = vpop.f32.mrb[0].mxu0
        %v2227 = vadd.f32 0.0, %v2226
        %2228 = vmatprep.mubr.f32.mxu0 0.0
        %v2229 = vand.u32 %v202, 4294901760
        %v2230 = vsub.f32 %v202, %v2229
        %v2231 = vand.u32 %v2230, 4294901760
        %v2232 = vsub.f32 %v2230, %v2231
        %v2233 = vand.u32 %v2232, 4294901760
        %2234 = vmatmul.mubr.f32.gmra.mrb[0].mxu0 %v2233
        %v2235 = vpop.f32.mrb[0].mxu0
        %v2236 = vadd.f32 0.0, %v2235
        %v2237 = vpop.f32.mrb[0].mxu0
        %v2238 = vadd.f32 0.0, %v2237
        %2239 = vmatprep.mubr.f32.mxu0 0.0
        %v2240 = vand.u32 %v205, 4294901760
        %v2241 = vsub.f32 %v205, %v2240
        %v2242 = vand.u32 %v2241, 4294901760
        %v2243 = vsub.f32 %v2241, %v2242
        %v2244 = vand.u32 %v2243, 4294901760
        %2245 = vmatmul.mubr.f32.gmra.mrb[0].mxu0 %v2244
        %v2246 = vpop.f32.mrb[0].mxu0
        %v2247 = vadd.f32 0.0, %v2246
        %v2248 = vpop.f32.mrb[0].mxu0
        %v2249 = vadd.f32 0.0, %v2248
        %2250 = vmatprep.mubr.f32.mxu0 0.0
        %v2251 = vand.u32 %v208, 4294901760
        %v2252 = vsub.f32 %v208, %v2251
        %v2253 = vand.u32 %v2252, 4294901760
        %v2254 = vsub.f32 %v2252, %v2253
        %v2255 = vand.u32 %v2254, 4294901760
        %2256 = vmatmul.mubr.f32.gmra.mrb[0].mxu0 %v2255
        %v2257 = vpop.f32.mrb[0].mxu0
        %v2258 = vadd.f32 0.0, %v2257
        %v2259 = vpop.f32.mrb[0].mxu0
        %v2260 = vadd.f32 0.0, %v2259
        %2261 = vdwg.mxu0
        %v2262 = vand.u32 %v1506, 4294901760
        %v2263 = vsub.f32 %v1506, %v2262
        %v2264 = vand.u32 %v2263, 4294901760
        %v2265 = vsub.f32 %v2263, %v2264
        %v2266 = vand.u32 %v2265, 4294901760
        %2267 = vmatprep.subr.mxu0 %v2266
        %v2268 = vand.u32 %v1505, 4294901760
        %v2269 = vsub.f32 %v1505, %v2268
        %v2270 = vand.u32 %v2269, 4294901760
        %v2271 = vsub.f32 %v2269, %v2270
        %v2272 = vand.u32 %v2271, 4294901760
        %2273 = vmatpush1.msra.mxu0 %v2272
        %v2274 = vand.u32 %v1510, 4294901760
        %v2275 = vsub.f32 %v1510, %v2274
        %v2276 = vand.u32 %v2275, 4294901760
        %v2277 = vsub.f32 %v2275, %v2276
        %v2278 = vand.u32 %v2277, 4294901760
        %2279 = vmatprep.subr.mxu0 %v2278
        %v2280 = vand.u32 %v1509, 4294901760
        %v2281 = vsub.f32 %v1509, %v2280
        %v2282 = vand.u32 %v2281, 4294901760
        %v2283 = vsub.f32 %v2281, %v2282
        %v2284 = vand.u32 %v2283, 4294901760
        %2285 = vmatpush1.msra.mxu0 %v2284
        %2286 = vmatprep.subr.mxu0 0.0
        %2287 = vmatpush1.msra.mxu0 0.0
        %2288 = vmatprep.subr.mxu0 0.0
        %2289 = vmatpush1.msra.mxu0 0.0
        %2290 = vmatprep.subr.mxu0 0.0
        %2291 = vmatpush1.msra.mxu0 0.0
        %2292 = vmatprep.subr.mxu0 0.0
        %2293 = vmatpush1.msra.mxu0 0.0
        %2294 = vmatprep.subr.mxu0 0.0
        %2295 = vmatpush1.msra.mxu0 0.0
        %2296 = vmatprep.subr.mxu0 0.0
        %2297 = vmatpush1.msra.mxu0 0.0
        %2298 = vmatprep.subr.mxu0 0.0
        %2299 = vmatpush1.msra.mxu0 0.0
        %2300 = vmatprep.subr.mxu0 0.0
        %2301 = vmatpush1.msra.mxu0 0.0
        %2302 = vmatprep.subr.mxu0 0.0
        %2303 = vmatpush1.msra.mxu0 0.0
        %2304 = vmatprep.subr.mxu0 0.0
        %2305 = vmatpush1.msra.mxu0 0.0
        %2306 = vmatprep.subr.mxu0 0.0
        %2307 = vmatpush1.msra.mxu0 0.0
        %2308 = vmatprep.subr.mxu0 0.0
        %2309 = vmatpush1.msra.mxu0 0.0
        %2310 = vmatprep.subr.mxu0 0.0
        %2311 = vmatpush1.msra.mxu0 0.0
        %2312 = vmatprep.subr.mxu0 0.0
        %2313 = vmatpush1.msra.mxu0 0.0
        %2314 = vmatprep.subr.mxu0 0.0
        %2315 = vmatpush1.msra.mxu0 0.0
        %2316 = vmatprep.subr.mxu0 0.0
        %2317 = vmatpush1.msra.mxu0 0.0
        %2318 = vmatprep.subr.mxu0 0.0
        %2319 = vmatpush1.msra.mxu0 0.0
        %2320 = vmatprep.subr.mxu0 0.0
        %2321 = vmatpush1.msra.mxu0 0.0
        %2322 = vmatprep.subr.mxu0 0.0
        %2323 = vmatpush1.msra.mxu0 0.0
        %2324 = vmatprep.subr.mxu0 0.0
        %2325 = vmatpush1.msra.mxu0 0.0
        %2326 = vmatprep.subr.mxu0 0.0
        %2327 = vmatpush1.msra.mxu0 0.0
        %2328 = vmatprep.subr.mxu0 0.0
        %2329 = vmatpush1.msra.mxu0 0.0
        %2330 = vmatprep.subr.mxu0 0.0
        %2331 = vmatpush1.msra.mxu0 0.0
        %2332 = vmatprep.subr.mxu0 0.0
        %2333 = vmatpush1.msra.mxu0 0.0
        %2334 = vmatprep.subr.mxu0 0.0
        %2335 = vmatpush1.msra.mxu0 0.0
        %2336 = vmatprep.subr.mxu0 0.0
        %2337 = vmatpush1.msra.mxu0 0.0
        %2338 = vmatprep.subr.mxu0 0.0
        %2339 = vmatpush1.msra.mxu0 0.0
        %2340 = vmatprep.subr.mxu0 0.0
        %2341 = vmatpush1.msra.mxu0 0.0
        %2342 = vmatprep.subr.mxu0 0.0
        %2343 = vmatpush1.msra.mxu0 0.0
        %2344 = vmatprep.subr.mxu0 0.0
        %2345 = vmatpush1.msra.mxu0 0.0
        %2346 = vmatprep.mubr.f32.mxu0 0.0
        %v2347 = vand.u32 %v199, 4294901760
        %2348 = vmatmul.mubr.f32.gmra.mrb[0].mxu0 %v2347
        %v2349 = vpop.f32.mrb[0].mxu0
        %v2350 = vadd.f32 %v2225, %v2349
        %v2351 = vpop.f32.mrb[0].mxu0
        %v2352 = vadd.f32 %v2227, %v2351
        %2353 = vmatprep.mubr.f32.mxu0 0.0
        %v2354 = vand.u32 %v202, 4294901760
        %2355 = vmatmul.mubr.f32.gmra.mrb[0].mxu0 %v2354
        %v2356 = vpop.f32.mrb[0].mxu0
        %v2357 = vadd.f32 %v2236, %v2356
        %v2358 = vpop.f32.mrb[0].mxu0
        %v2359 = vadd.f32 %v2238, %v2358
        %2360 = vmatprep.mubr.f32.mxu0 0.0
        %v2361 = vand.u32 %v205, 4294901760
        %2362 = vmatmul.mubr.f32.gmra.mrb[0].mxu0 %v2361
        %v2363 = vpop.f32.mrb[0].mxu0
        %v2364 = vadd.f32 %v2247, %v2363
        %v2365 = vpop.f32.mrb[0].mxu0
        %v2366 = vadd.f32 %v2249, %v2365
        %2367 = vmatprep.mubr.f32.mxu0 0.0
        %v2368 = vand.u32 %v208, 4294901760
        %2369 = vmatmul.mubr.f32.gmra.mrb[0].mxu0 %v2368
        %v2370 = vpop.f32.mrb[0].mxu0
        %v2371 = vadd.f32 %v2258, %v2370
        %v2372 = vpop.f32.mrb[0].mxu0
        %v2373 = vadd.f32 %v2260, %v2372
        %2374 = vdwg.mxu0
        %v2375 = vand.u32 %v1506, 4294901760
        %v2376 = vsub.f32 %v1506, %v2375
        %2377 = vmatprep.subr.mxu0 %v2376
        %v2378 = vand.u32 %v1505, 4294901760
        %v2379 = vsub.f32 %v1505, %v2378
        %2380 = vmatpush1.msra.mxu0 %v2379
        %v2381 = vand.u32 %v1510, 4294901760
        %v2382 = vsub.f32 %v1510, %v2381
        %2383 = vmatprep.subr.mxu0 %v2382
        %v2384 = vand.u32 %v1509, 4294901760
        %v2385 = vsub.f32 %v1509, %v2384
        %2386 = vmatpush1.msra.mxu0 %v2385
        %2387 = vmatprep.subr.mxu0 0.0
        %2388 = vmatpush1.msra.mxu0 0.0
        %2389 = vmatprep.subr.mxu0 0.0
        %2390 = vmatpush1.msra.mxu0 0.0
        %2391 = vmatprep.subr.mxu0 0.0
        %2392 = vmatpush1.msra.mxu0 0.0
        %2393 = vmatprep.subr.mxu0 0.0
        %2394 = vmatpush1.msra.mxu0 0.0
        %2395 = vmatprep.subr.mxu0 0.0
        %2396 = vmatpush1.msra.mxu0 0.0
        %2397 = vmatprep.subr.mxu0 0.0
        %2398 = vmatpush1.msra.mxu0 0.0
        %2399 = vmatprep.subr.mxu0 0.0
        %2400 = vmatpush1.msra.mxu0 0.0
        %2401 = vmatprep.subr.mxu0 0.0
        %2402 = vmatpush1.msra.mxu0 0.0
        %2403 = vmatprep.subr.mxu0 0.0
        %2404 = vmatpush1.msra.mxu0 0.0
        %2405 = vmatprep.subr.mxu0 0.0
        %2406 = vmatpush1.msra.mxu0 0.0
        %2407 = vmatprep.subr.mxu0 0.0
        %2408 = vmatpush1.msra.mxu0 0.0
        %2409 = vmatprep.subr.mxu0 0.0
        %2410 = vmatpush1.msra.mxu0 0.0
        %2411 = vmatprep.subr.mxu0 0.0
        %2412 = vmatpush1.msra.mxu0 0.0
        %2413 = vmatprep.subr.mxu0 0.0
        %2414 = vmatpush1.msra.mxu0 0.0
        %2415 = vmatprep.subr.mxu0 0.0
        %2416 = vmatpush1.msra.mxu0 0.0
        %2417 = vmatprep.subr.mxu0 0.0
        %2418 = vmatpush1.msra.mxu0 0.0
        %2419 = vmatprep.subr.mxu0 0.0
        %2420 = vmatpush1.msra.mxu0 0.0
        %2421 = vmatprep.subr.mxu0 0.0
        %2422 = vmatpush1.msra.mxu0 0.0
        %2423 = vmatprep.subr.mxu0 0.0
        %2424 = vmatpush1.msra.mxu0 0.0
        %2425 = vmatprep.subr.mxu0 0.0
        %2426 = vmatpush1.msra.mxu0 0.0
        %2427 = vmatprep.subr.mxu0 0.0
        %2428 = vmatpush1.msra.mxu0 0.0
        %2429 = vmatprep.subr.mxu0 0.0
        %2430 = vmatpush1.msra.mxu0 0.0
        %2431 = vmatprep.subr.mxu0 0.0
        %2432 = vmatpush1.msra.mxu0 0.0
        %2433 = vmatprep.subr.mxu0 0.0
        %2434 = vmatpush1.msra.mxu0 0.0
        %2435 = vmatprep.subr.mxu0 0.0
        %2436 = vmatpush1.msra.mxu0 0.0
        %2437 = vmatprep.subr.mxu0 0.0
        %2438 = vmatpush1.msra.mxu0 0.0
        %2439 = vmatprep.subr.mxu0 0.0
        %2440 = vmatpush1.msra.mxu0 0.0
        %2441 = vmatprep.subr.mxu0 0.0
        %2442 = vmatpush1.msra.mxu0 0.0
        %2443 = vmatprep.subr.mxu0 0.0
        %2444 = vmatpush1.msra.mxu0 0.0
        %2445 = vmatprep.subr.mxu0 0.0
        %2446 = vmatpush1.msra.mxu0 0.0
        %2447 = vmatprep.mubr.f32.mxu0 0.0
        %v2448 = vand.u32 %v199, 4294901760
        %v2449 = vsub.f32 %v199, %v2448
        %2450 = vmatmul.mubr.f32.gmra.mrb[0].mxu0 %v2449
        %v2451 = vpop.f32.mrb[0].mxu0
        %v2452 = vadd.f32 %v2350, %v2451
        %v2453 = vpop.f32.mrb[0].mxu0
        %v2454 = vadd.f32 %v2352, %v2453
        %2455 = vmatprep.mubr.f32.mxu0 0.0
        %v2456 = vand.u32 %v202, 4294901760
        %v2457 = vsub.f32 %v202, %v2456
        %2458 = vmatmul.mubr.f32.gmra.mrb[0].mxu0 %v2457
        %v2459 = vpop.f32.mrb[0].mxu0
        %v2460 = vadd.f32 %v2357, %v2459
        %v2461 = vpop.f32.mrb[0].mxu0
        %v2462 = vadd.f32 %v2359, %v2461
        %2463 = vmatprep.mubr.f32.mxu0 0.0
        %v2464 = vand.u32 %v205, 4294901760
        %v2465 = vsub.f32 %v205, %v2464
        %2466 = vmatmul.mubr.f32.gmra.mrb[0].mxu0 %v2465
        %v2467 = vpop.f32.mrb[0].mxu0
        %v2468 = vadd.f32 %v2364, %v2467
        %v2469 = vpop.f32.mrb[0].mxu0
        %v2470 = vadd.f32 %v2366, %v2469
        %2471 = vmatprep.mubr.f32.mxu0 0.0
        %v2472 = vand.u32 %v208, 4294901760
        %v2473 = vsub.f32 %v208, %v2472
        %2474 = vmatmul.mubr.f32.gmra.mrb[0].mxu0 %v2473
        %v2475 = vpop.f32.mrb[0].mxu0
        %v2476 = vadd.f32 %v2371, %v2475
        %v2477 = vpop.f32.mrb[0].mxu0
        %v2478 = vadd.f32 %v2373, %v2477
        %2479 = vdwg.mxu0
        %v2480 = vand.u32 %v1506, 4294901760
        %2481 = vmatprep.subr.mxu0 %v2480
        %v2482 = vand.u32 %v1505, 4294901760
        %2483 = vmatpush1.msra.mxu0 %v2482
        %v2484 = vand.u32 %v1510, 4294901760
        %2485 = vmatprep.subr.mxu0 %v2484
        %v2486 = vand.u32 %v1509, 4294901760
        %2487 = vmatpush1.msra.mxu0 %v2486
        %2488 = vmatprep.subr.mxu0 0.0
        %2489 = vmatpush1.msra.mxu0 0.0
        %2490 = vmatprep.subr.mxu0 0.0
        %2491 = vmatpush1.msra.mxu0 0.0
        %2492 = vmatprep.subr.mxu0 0.0
        %2493 = vmatpush1.msra.mxu0 0.0
        %2494 = vmatprep.subr.mxu0 0.0
        %2495 = vmatpush1.msra.mxu0 0.0
        %2496 = vmatprep.subr.mxu0 0.0
        %2497 = vmatpush1.msra.mxu0 0.0
        %2498 = vmatprep.subr.mxu0 0.0
        %2499 = vmatpush1.msra.mxu0 0.0
        %2500 = vmatprep.subr.mxu0 0.0
        %2501 = vmatpush1.msra.mxu0 0.0
        %2502 = vmatprep.subr.mxu0 0.0
        %2503 = vmatpush1.msra.mxu0 0.0
        %2504 = vmatprep.subr.mxu0 0.0
        %2505 = vmatpush1.msra.mxu0 0.0
        %2506 = vmatprep.subr.mxu0 0.0
        %2507 = vmatpush1.msra.mxu0 0.0
        %2508 = vmatprep.subr.mxu0 0.0
        %2509 = vmatpush1.msra.mxu0 0.0
        %2510 = vmatprep.subr.mxu0 0.0
        %2511 = vmatpush1.msra.mxu0 0.0
        %2512 = vmatprep.subr.mxu0 0.0
        %2513 = vmatpush1.msra.mxu0 0.0
        %2514 = vmatprep.subr.mxu0 0.0
        %2515 = vmatpush1.msra.mxu0 0.0
        %2516 = vmatprep.subr.mxu0 0.0
        %2517 = vmatpush1.msra.mxu0 0.0
        %2518 = vmatprep.subr.mxu0 0.0
        %2519 = vmatpush1.msra.mxu0 0.0
        %2520 = vmatprep.subr.mxu0 0.0
        %2521 = vmatpush1.msra.mxu0 0.0
        %2522 = vmatprep.subr.mxu0 0.0
        %2523 = vmatpush1.msra.mxu0 0.0
        %2524 = vmatprep.subr.mxu0 0.0
        %2525 = vmatpush1.msra.mxu0 0.0
        %2526 = vmatprep.subr.mxu0 0.0
        %2527 = vmatpush1.msra.mxu0 0.0
        %2528 = vmatprep.subr.mxu0 0.0
        %2529 = vmatpush1.msra.mxu0 0.0
        %2530 = vmatprep.subr.mxu0 0.0
        %2531 = vmatpush1.msra.mxu0 0.0
        %2532 = vmatprep.subr.mxu0 0.0
        %2533 = vmatpush1.msra.mxu0 0.0
        %2534 = vmatprep.subr.mxu0 0.0
        %2535 = vmatpush1.msra.mxu0 0.0
        %2536 = vmatprep.subr.mxu0 0.0
        %2537 = vmatpush1.msra.mxu0 0.0
        %2538 = vmatprep.subr.mxu0 0.0
        %2539 = vmatpush1.msra.mxu0 0.0
        %2540 = vmatprep.subr.mxu0 0.0
        %2541 = vmatpush1.msra.mxu0 0.0
        %2542 = vmatprep.subr.mxu0 0.0
        %2543 = vmatpush1.msra.mxu0 0.0
        %2544 = vmatprep.subr.mxu0 0.0
        %2545 = vmatpush1.msra.mxu0 0.0
        %2546 = vmatprep.subr.mxu0 0.0
        %2547 = vmatpush1.msra.mxu0 0.0
        %2548 = vmatprep.mubr.f32.mxu0 0.0
        %v2549 = vand.u32 %v199, 4294901760
        %v2550 = vsub.f32 %v199, %v2549
        %v2551 = vand.u32 %v2550, 4294901760
        %2552 = vmatmul.mubr.f32.gmra.mrb[0].mxu0 %v2551
        %v2553 = vpop.f32.mrb[0].mxu0
        %v2554 = vadd.f32 %v2452, %v2553
        %v2555 = vpop.f32.mrb[0].mxu0
        %v2556 = vadd.f32 %v2454, %v2555
        %2557 = vmatprep.mubr.f32.mxu0 0.0
        %v2558 = vand.u32 %v202, 4294901760
        %v2559 = vsub.f32 %v202, %v2558
        %v2560 = vand.u32 %v2559, 4294901760
        %2561 = vmatmul.mubr.f32.gmra.mrb[0].mxu0 %v2560
        %v2562 = vpop.f32.mrb[0].mxu0
        %v2563 = vadd.f32 %v2460, %v2562
        %v2564 = vpop.f32.mrb[0].mxu0
        %v2565 = vadd.f32 %v2462, %v2564
        %2566 = vmatprep.mubr.f32.mxu0 0.0
        %v2567 = vand.u32 %v205, 4294901760
        %v2568 = vsub.f32 %v205, %v2567
        %v2569 = vand.u32 %v2568, 4294901760
        %2570 = vmatmul.mubr.f32.gmra.mrb[0].mxu0 %v2569
        %v2571 = vpop.f32.mrb[0].mxu0
        %v2572 = vadd.f32 %v2468, %v2571
        %v2573 = vpop.f32.mrb[0].mxu0
        %v2574 = vadd.f32 %v2470, %v2573
        %2575 = vmatprep.mubr.f32.mxu0 0.0
        %v2576 = vand.u32 %v208, 4294901760
        %v2577 = vsub.f32 %v208, %v2576
        %v2578 = vand.u32 %v2577, 4294901760
        %2579 = vmatmul.mubr.f32.gmra.mrb[0].mxu0 %v2578
        %v2580 = vpop.f32.mrb[0].mxu0
        %v2581 = vadd.f32 %v2476, %v2580
        %v2582 = vpop.f32.mrb[0].mxu0
        %v2583 = vadd.f32 %v2478, %v2582
        %2584 = vdwg.mxu0
        %v2585 = vand.u32 %v1506, 4294901760
        %v2586 = vsub.f32 %v1506, %v2585
        %v2587 = vand.u32 %v2586, 4294901760
        %2588 = vmatprep.subr.mxu0 %v2587
        %v2589 = vand.u32 %v1505, 4294901760
        %v2590 = vsub.f32 %v1505, %v2589
        %v2591 = vand.u32 %v2590, 4294901760
        %2592 = vmatpush1.msra.mxu0 %v2591
        %v2593 = vand.u32 %v1510, 4294901760
        %v2594 = vsub.f32 %v1510, %v2593
        %v2595 = vand.u32 %v2594, 4294901760
        %2596 = vmatprep.subr.mxu0 %v2595
        %v2597 = vand.u32 %v1509, 4294901760
        %v2598 = vsub.f32 %v1509, %v2597
        %v2599 = vand.u32 %v2598, 4294901760
        %2600 = vmatpush1.msra.mxu0 %v2599
        %2601 = vmatprep.subr.mxu0 0.0
        %2602 = vmatpush1.msra.mxu0 0.0
        %2603 = vmatprep.subr.mxu0 0.0
        %2604 = vmatpush1.msra.mxu0 0.0
        %2605 = vmatprep.subr.mxu0 0.0
        %2606 = vmatpush1.msra.mxu0 0.0
        %2607 = vmatprep.subr.mxu0 0.0
        %2608 = vmatpush1.msra.mxu0 0.0
        %2609 = vmatprep.subr.mxu0 0.0
        %2610 = vmatpush1.msra.mxu0 0.0
        %2611 = vmatprep.subr.mxu0 0.0
        %2612 = vmatpush1.msra.mxu0 0.0
        %2613 = vmatprep.subr.mxu0 0.0
        %2614 = vmatpush1.msra.mxu0 0.0
        %2615 = vmatprep.subr.mxu0 0.0
        %2616 = vmatpush1.msra.mxu0 0.0
        %2617 = vmatprep.subr.mxu0 0.0
        %2618 = vmatpush1.msra.mxu0 0.0
        %2619 = vmatprep.subr.mxu0 0.0
        %2620 = vmatpush1.msra.mxu0 0.0
        %2621 = vmatprep.subr.mxu0 0.0
        %2622 = vmatpush1.msra.mxu0 0.0
        %2623 = vmatprep.subr.mxu0 0.0
        %2624 = vmatpush1.msra.mxu0 0.0
        %2625 = vmatprep.subr.mxu0 0.0
        %2626 = vmatpush1.msra.mxu0 0.0
        %2627 = vmatprep.subr.mxu0 0.0
        %2628 = vmatpush1.msra.mxu0 0.0
        %2629 = vmatprep.subr.mxu0 0.0
        %2630 = vmatpush1.msra.mxu0 0.0
        %2631 = vmatprep.subr.mxu0 0.0
        %2632 = vmatpush1.msra.mxu0 0.0
        %2633 = vmatprep.subr.mxu0 0.0
        %2634 = vmatpush1.msra.mxu0 0.0
        %2635 = vmatprep.subr.mxu0 0.0
        %2636 = vmatpush1.msra.mxu0 0.0
        %2637 = vmatprep.subr.mxu0 0.0
        %2638 = vmatpush1.msra.mxu0 0.0
        %2639 = vmatprep.subr.mxu0 0.0
        %2640 = vmatpush1.msra.mxu0 0.0
        %2641 = vmatprep.subr.mxu0 0.0
        %2642 = vmatpush1.msra.mxu0 0.0
        %2643 = vmatprep.subr.mxu0 0.0
        %2644 = vmatpush1.msra.mxu0 0.0
        %2645 = vmatprep.subr.mxu0 0.0
        %2646 = vmatpush1.msra.mxu0 0.0
        %2647 = vmatprep.subr.mxu0 0.0
        %2648 = vmatpush1.msra.mxu0 0.0
        %2649 = vmatprep.subr.mxu0 0.0
        %2650 = vmatpush1.msra.mxu0 0.0
        %2651 = vmatprep.subr.mxu0 0.0
        %2652 = vmatpush1.msra.mxu0 0.0
        %2653 = vmatprep.subr.mxu0 0.0
        %2654 = vmatpush1.msra.mxu0 0.0
        %2655 = vmatprep.subr.mxu0 0.0
        %2656 = vmatpush1.msra.mxu0 0.0
        %2657 = vmatprep.subr.mxu0 0.0
        %2658 = vmatpush1.msra.mxu0 0.0
        %2659 = vmatprep.subr.mxu0 0.0
        %2660 = vmatpush1.msra.mxu0 0.0
        %2661 = vmatprep.mubr.f32.mxu0 0.0
        %v2662 = vand.u32 %v199, 4294901760
        %2663 = vmatmul.mubr.f32.gmra.mrb[0].mxu0 %v2662
        %v2664 = vpop.f32.mrb[0].mxu0
        %v2665 = vadd.f32 %v2554, %v2664
        %v2666 = vpop.f32.mrb[0].mxu0
        %v2667 = vadd.f32 %v2556, %v2666
        %2668 = vmatprep.mubr.f32.mxu0 0.0
        %v2669 = vand.u32 %v202, 4294901760
        %2670 = vmatmul.mubr.f32.gmra.mrb[0].mxu0 %v2669
        %v2671 = vpop.f32.mrb[0].mxu0
        %v2672 = vadd.f32 %v2563, %v2671
        %v2673 = vpop.f32.mrb[0].mxu0
        %v2674 = vadd.f32 %v2565, %v2673
        %2675 = vmatprep.mubr.f32.mxu0 0.0
        %v2676 = vand.u32 %v205, 4294901760
        %2677 = vmatmul.mubr.f32.gmra.mrb[0].mxu0 %v2676
        %v2678 = vpop.f32.mrb[0].mxu0
        %v2679 = vadd.f32 %v2572, %v2678
        %v2680 = vpop.f32.mrb[0].mxu0
        %v2681 = vadd.f32 %v2574, %v2680
        %2682 = vmatprep.mubr.f32.mxu0 0.0
        %v2683 = vand.u32 %v208, 4294901760
        %2684 = vmatmul.mubr.f32.gmra.mrb[0].mxu0 %v2683
        %v2685 = vpop.f32.mrb[0].mxu0
        %v2686 = vadd.f32 %v2581, %v2685
        %v2687 = vpop.f32.mrb[0].mxu0
        %v2688 = vadd.f32 %v2583, %v2687
        %2689 = vdwg.mxu0
        %v2690 = vand.u32 %v1506, 4294901760
        %2691 = vmatprep.subr.mxu0 %v2690
        %v2692 = vand.u32 %v1505, 4294901760
        %2693 = vmatpush1.msra.mxu0 %v2692
        %v2694 = vand.u32 %v1510, 4294901760
        %2695 = vmatprep.subr.mxu0 %v2694
        %v2696 = vand.u32 %v1509, 4294901760
        %2697 = vmatpush1.msra.mxu0 %v2696
        %2698 = vmatprep.subr.mxu0 0.0
        %2699 = vmatpush1.msra.mxu0 0.0
        %2700 = vmatprep.subr.mxu0 0.0
        %2701 = vmatpush1.msra.mxu0 0.0
        %2702 = vmatprep.subr.mxu0 0.0
        %2703 = vmatpush1.msra.mxu0 0.0
        %2704 = vmatprep.subr.mxu0 0.0
        %2705 = vmatpush1.msra.mxu0 0.0
        %2706 = vmatprep.subr.mxu0 0.0
        %2707 = vmatpush1.msra.mxu0 0.0
        %2708 = vmatprep.subr.mxu0 0.0
        %2709 = vmatpush1.msra.mxu0 0.0
        %2710 = vmatprep.subr.mxu0 0.0
        %2711 = vmatpush1.msra.mxu0 0.0
        %2712 = vmatprep.subr.mxu0 0.0
        %2713 = vmatpush1.msra.mxu0 0.0
        %2714 = vmatprep.subr.mxu0 0.0
        %2715 = vmatpush1.msra.mxu0 0.0
        %2716 = vmatprep.subr.mxu0 0.0
        %2717 = vmatpush1.msra.mxu0 0.0
        %2718 = vmatprep.subr.mxu0 0.0
        %2719 = vmatpush1.msra.mxu0 0.0
        %2720 = vmatprep.subr.mxu0 0.0
        %2721 = vmatpush1.msra.mxu0 0.0
        %2722 = vmatprep.subr.mxu0 0.0
        %2723 = vmatpush1.msra.mxu0 0.0
        %2724 = vmatprep.subr.mxu0 0.0
        %2725 = vmatpush1.msra.mxu0 0.0
        %2726 = vmatprep.subr.mxu0 0.0
        %2727 = vmatpush1.msra.mxu0 0.0
        %2728 = vmatprep.subr.mxu0 0.0
        %2729 = vmatpush1.msra.mxu0 0.0
        %2730 = vmatprep.subr.mxu0 0.0
        %2731 = vmatpush1.msra.mxu0 0.0
        %2732 = vmatprep.subr.mxu0 0.0
        %2733 = vmatpush1.msra.mxu0 0.0
        %2734 = vmatprep.subr.mxu0 0.0
        %2735 = vmatpush1.msra.mxu0 0.0
        %2736 = vmatprep.subr.mxu0 0.0
        %2737 = vmatpush1.msra.mxu0 0.0
        %2738 = vmatprep.subr.mxu0 0.0
        %2739 = vmatpush1.msra.mxu0 0.0
        %2740 = vmatprep.subr.mxu0 0.0
        %2741 = vmatpush1.msra.mxu0 0.0
        %2742 = vmatprep.subr.mxu0 0.0
        %2743 = vmatpush1.msra.mxu0 0.0
        %2744 = vmatprep.subr.mxu0 0.0
        %2745 = vmatpush1.msra.mxu0 0.0
        %2746 = vmatprep.subr.mxu0 0.0
        %2747 = vmatpush1.msra.mxu0 0.0
        %2748 = vmatprep.subr.mxu0 0.0
        %2749 = vmatpush1.msra.mxu0 0.0
        %2750 = vmatprep.subr.mxu0 0.0
        %2751 = vmatpush1.msra.mxu0 0.0
        %2752 = vmatprep.subr.mxu0 0.0
        %2753 = vmatpush1.msra.mxu0 0.0
        %2754 = vmatprep.subr.mxu0 0.0
        %2755 = vmatpush1.msra.mxu0 0.0
        %2756 = vmatprep.subr.mxu0 0.0
        %2757 = vmatpush1.msra.mxu0 0.0
        %2758 = vmatprep.mubr.f32.mxu0 0.0
        %v2759 = vand.u32 %v199, 4294901760
        %2760 = vmatmul.mubr.f32.gmra.mrb[0].mxu0 %v2759
        %v2761 = vpop.f32.mrb[0].mxu0
        %v2762 = vadd.f32 %v2665, %v2761
        %v2763 = vpop.f32.mrb[0].mxu0
        %v2764 = vadd.f32 %v2667, %v2763
        %2765 = vmatprep.mubr.f32.mxu0 0.0
        %v2766 = vand.u32 %v202, 4294901760
        %2767 = vmatmul.mubr.f32.gmra.mrb[0].mxu0 %v2766
        %v2768 = vpop.f32.mrb[0].mxu0
        %v2769 = vadd.f32 %v2672, %v2768
        %v2770 = vpop.f32.mrb[0].mxu0
        %v2771 = vadd.f32 %v2674, %v2770
        %2772 = vmatprep.mubr.f32.mxu0 0.0
        %v2773 = vand.u32 %v205, 4294901760
        %2774 = vmatmul.mubr.f32.gmra.mrb[0].mxu0 %v2773
        %v2775 = vpop.f32.mrb[0].mxu0
        %v2776 = vadd.f32 %v2679, %v2775
        %v2777 = vpop.f32.mrb[0].mxu0
        %v2778 = vadd.f32 %v2681, %v2777
        %2779 = vmatprep.mubr.f32.mxu0 0.0
        %v2780 = vand.u32 %v208, 4294901760
        %2781 = vmatmul.mubr.f32.gmra.mrb[0].mxu0 %v2780
        %v2782 = vpop.f32.mrb[0].mxu0
        %v2783 = vadd.f32 %v2686, %v2782
        %v2784 = vpop.f32.mrb[0].mxu0
        %v2785 = vadd.f32 %v2688, %v2784
        %2786 = vdwg.mxu0
        %s2787 = scalar_lea.vmem %s180, 128 [#allocation5]
        %2788 = vst [vmem:[%s2787] sm:$0xff] %v2124
        %2789 = vst [vmem:[%s2787 + $0x8] sm:$0xff] %v2126
        %2790 = vst [vmem:[%s2787 + $0x10] sm:$0xff] %v2762
        %2791 = vst [vmem:[%s2787 + $0x18] sm:$0xff] %v2764
        %2792 = vst [vmem:[%s2787 + $0x20] sm:$0xff] %v2131
        %2793 = vst [vmem:[%s2787 + $0x28] sm:$0xff] %v2133
        %2794 = vst [vmem:[%s2787 + $0x30] sm:$0xff] %v2769
        %2795 = vst [vmem:[%s2787 + $0x38] sm:$0xff] %v2771
        %2796 = vst [vmem:[%s2787 + $0x40] sm:$0xff] %v2138
        %2797 = vst [vmem:[%s2787 + $0x48] sm:$0xff] %v2140
        %2798 = vst [vmem:[%s2787 + $0x50] sm:$0xff] %v2776
        %2799 = vst [vmem:[%s2787 + $0x58] sm:$0xff] %v2778
        %2800 = vst [vmem:[%s2787 + $0x60] sm:$0xff] %v2145
        %2801 = vst [vmem:[%s2787 + $0x68] sm:$0xff] %v2147
        %2802 = vst [vmem:[%s2787 + $0x70] sm:$0xff] %v2783
        %2803 = vst [vmem:[%s2787 + $0x78] sm:$0xff] %v2785
        %s2804 = sand.u32 %s90, 1
        %s2805 = scalar_lea.sflag [#allocation4], %s2804
        %s2806 = sand.u32 %s90, 1
        %s2807 = smul.addr %s2806, 256
        %s2808 = scalar_lea.vmem [#allocation5], %s2807
        // Predicated region
        $region33: #{tpu_custom_call.1} parent=27 // pred_check
          %p2809 = pneg %p100
        $region34: #{tpu_custom_call.1} parent=27 // pred_check_branch
          %2811 = sbr.rel (%p2809) target = $region36
        $region35: #{tpu_custom_call.1} parent=27 // pred_region
          %s2812 = smul.u32 2, %s23
          %s2813 = smul.u32 4, %s24
          %s2815 = ssub.s32 4096, 4096
          %2816 = vsyncadd %s2805, %s2815
          %s2817 = smul.addr %s2812, 16
          %s2818 = sadd.s32 %s2813, %s2817
          %s2819 = smul.addr %s2818, 128
          %s2820 = scalar_lea.hbm %s2, %s2819
          %s2821 = sshll.u32 %s2808, 4
          %s2822 = int_to_ptr.vmem [resolvable:$true] %s2821
          %2827 = dma.vmem_to_hbm [thread:$0]  %s2822, 4096, %s2820, %s2805, 512, 512, 32
        $region36: #{tpu_custom_call.1} parent=27 // pred_fallthru
          _
      $region28: #{tpu_custom_call.1} parent=5 // pred_fallthru
        _
      %p2828 = scmp.le.s32.totalorder 2, %s14
      // Predicated region
      $region37: #{tpu_custom_call.1} parent=5 // pred_check
        %p2829 = pneg %p2828
      $region38: #{tpu_custom_call.1} parent=5 // pred_check_branch
        %2831 = sbr.rel (%p2829) target = $region40
      $region39: #{tpu_custom_call.1} parent=5 // pred_region
        %s2832 = ssub.s32 %s14, 2
        // Predicated region
        $region41: #{tpu_custom_call.1} parent=39 // pred_check
          %p2833 = pneg %p106
        $region42: #{tpu_custom_call.1} parent=39 // pred_check_branch
          %2835 = sbr.rel (%p2833) target = $region44
        $region43: #{tpu_custom_call.1} parent=39 // pred_region
          %s2836 = sand.u32 %s91, 1
          %s2837 = scalar_lea.sflag [#allocation4], %s2836
          %s2838 = sand.u32 %s91, 1
          %s2839 = smul.addr %s2838, 256
          %s2840 = scalar_lea.vmem [#allocation5], %s2839
          %2841 = dma.done %s2837, 4096
        $region44: #{tpu_custom_call.1} parent=39 // pred_fallthru
          _
      $region40: #{tpu_custom_call.1} parent=5 // pred_fallthru
        _
    $region6: #{tpu_custom_call.1} parent=1 // loop_footer
      %s18 = sadd.s32 1, %s14
    $region7: #{tpu_custom_call.1} parent=1 // loop_footer_branch
      %13 = sbr.rel target = $region3
    $region8: #{tpu_custom_call.1} parent=1 // loop_exit
      _
    %2842 = vsyncpa [#allocation3], 1
    %s2843 = scalar_lea.sflag [#allocation3], 1
    %2844 = vsyncpa %s2843, 1
    %2845 = vsyncpa [#allocation4], 1
    %s2846 = scalar_lea.sflag [#allocation4], 1
    %2847 = vsyncpa %s2846, 1

</llo_original>
